<compile_context>
chip_gen: v6e
topology: v6e:2x2x1
jax: 0.10.0
libtpu: 0.0.40
codegen_flags: <defaults>
</compile_context>

<pallas_src>
import functools
import math

import jax
import jax.numpy as jnp
import numpy as np
from jax.experimental import pallas as pl
from jax.experimental.pallas import tpu as pltpu

# ---------------- small synthetic ChatGLM2 config ----------------
VOCAB = 128          # padded_vocab_size
HIDDEN = 32          # hidden_size
N_HEADS = 4          # num_attention_heads
HEAD_DIM = HIDDEN // N_HEADS          # kv_channels
KV_GROUPS = 2        # multi_query_group_num (multi-query attention)
REP = N_HEADS // KV_GROUPS
FFN = 64             # ffn_hidden_size
N_LAYERS = 2         # num_layers
EPS = 1e-5           # layernorm_epsilon
ROT_DIM = HEAD_DIM // 2               # ChatGLM2 rotary covers half of head_dim
HALF_ROT = ROT_DIM // 2
BATCH = 2
SEQ = 8

Q_SIZE = N_HEADS * HEAD_DIM
KV_SIZE = KV_GROUPS * HEAD_DIM
QKV_OUT = Q_SIZE + 2 * KV_SIZE


# ---------------- in-kernel helpers ----------------
def _rmsnorm_f32(x, w):
    # x: [N, H] f32, w: [1, H] f32
    var = jnp.mean(x * x, axis=-1, keepdims=True)
    inv = jax.lax.rsqrt(var + EPS)
    return x * inv * w


def _sigmoid_f32(x):
    # exp (EUP) + approximate reciprocal (EUP) -> keeps VALU free.
    return pl.reciprocal(1.0 + jnp.exp(-x), approx=True)


# ---------------- fused transformer-layer kernel ----------------
def glm_layer_kernel(b, t,
                     x_ref, ln1_ref, qkvw_ref, qkvb_ref, densew_ref,
                     ln2_ref, h4w_ref, h2hw_ref, cos_ref, sin_ref, o_ref):
    bt = b * t
    x = x_ref[...].astype(jnp.float32)                       # [BT, H] residual

    # ---- attention block ----
    ln1 = _rmsnorm_f32(x, ln1_ref[...])
    qkv = jnp.dot(ln1.astype(jnp.bfloat16), qkvw_ref[...],
                  preferred_element_type=jnp.float32) + qkvb_ref[...]

    cos = cos_ref[...]                                        # [BT, HALF_ROT]
    sin = sin_ref[...]

    def rotate(h2d):
        # h2d: [BT, HEAD_DIM] f32 with de-interleaved rotary layout
        x1 = h2d[:, :HALF_ROT]
        x2 = h2d[:, HALF_ROT:ROT_DIM]
        xp = h2d[:, ROT_DIM:]
        r1 = x1 * cos - x2 * sin
        r2 = x2 * cos + x1 * sin
        return jnp.concatenate([r1, r2, xp], axis=-1)

    scale = 1.0 / math.sqrt(HEAD_DIM)
    qi = jax.lax.broadcasted_iota(jnp.int32, (t, t), 0)
    ki = jax.lax.broadcasted_iota(jnp.int32, (t, t), 1)
    causal = (ki <= qi)[None, :, :]

    # K/V per multi-query group (no jnp.repeat: heads index their group below)
    k_grp, v_grp = [], []
    for g in range(KV_GROUPS):
        k_lo = Q_SIZE + g * HEAD_DIM
        v_lo = Q_SIZE + KV_SIZE + g * HEAD_DIM
        kg = rotate(qkv[:, k_lo:k_lo + HEAD_DIM])
        vg = qkv[:, v_lo:v_lo + HEAD_DIM]
        k_grp.append(kg.reshape(b, t, HEAD_DIM).astype(jnp.bfloat16))
        v_grp.append(vg.reshape(b, t, HEAD_DIM).astype(jnp.bfloat16))

    ctx_heads = []
    for h in range(N_HEADS):
        g = h // REP
        qh = rotate(qkv[:, h * HEAD_DIM:(h + 1) * HEAD_DIM])
        qh = qh.reshape(b, t, HEAD_DIM).astype(jnp.bfloat16)
        s = jnp.einsum("bqd,bkd->bqk", qh, k_grp[g],
                       preferred_element_type=jnp.float32) * scale
        s = jnp.where(causal, s, -1e30)                       # mask stays f32
        m = jnp.max(s, axis=-1, keepdims=True)
        p = jnp.exp(s - m)
        p = p * pl.reciprocal(jnp.sum(p, axis=-1, keepdims=True), approx=True)
        ctx = jnp.einsum("bqk,bkd->bqd", p.astype(jnp.bfloat16), v_grp[g],
                         preferred_element_type=jnp.float32)
        ctx_heads.append(ctx.reshape(bt, HEAD_DIM))
    ctx_all = jnp.concatenate(ctx_heads, axis=-1)             # [BT, H] f32

    attn_out = jnp.dot(ctx_all.astype(jnp.bfloat16), densew_ref[...],
                       preferred_element_type=jnp.float32)
    x = x + attn_out                                          # residual (f32)

    # ---- MLP block ----
    ln2 = _rmsnorm_f32(x, ln2_ref[...])
    h4 = jnp.dot(ln2.astype(jnp.bfloat16), h4w_ref[...],
                 preferred_element_type=jnp.float32)          # [BT, 2F]
    a = h4[:, :FFN]
    gate = h4[:, FFN:]
    act = a * _sigmoid_f32(a) * gate                          # SwiGLU
    mlp_out = jnp.dot(act.astype(jnp.bfloat16), h2hw_ref[...],
                      preferred_element_type=jnp.float32)
    o_ref[...] = (x + mlp_out).astype(o_ref.dtype)


# ---------------- fused final-norm + output-projection kernel ----------------
def glm_head_kernel(x_ref, lnw_ref, ow_ref, o_ref):
    x = x_ref[...].astype(jnp.float32)
    normed = _rmsnorm_f32(x, lnw_ref[...])
    o_ref[...] = jnp.dot(normed.astype(jnp.bfloat16), ow_ref[...],
                         preferred_element_type=jnp.float32).astype(o_ref.dtype)


# ---------------- wrappers ----------------
_VMEM = pl.BlockSpec(memory_space=pltpu.MemorySpace.VMEM)


def glm_layer(x2d, lyr, cos_bt, sin_bt, b, t):
    args = (x2d, lyr["ln1_w"], lyr["qkv_w"], lyr["qkv_b"], lyr["dense_w"],
            lyr["ln2_w"], lyr["h_to_4h_w"], lyr["4h_to_h_w"], cos_bt, sin_bt)
    # TODO(synk): at real ChatGLM2 sizes (H=4096, FFN=13696) add a BlockSpec
    # grid over tokens / weight N,K dims with f32 VMEM accumulators; the
    # whole-array VMEM layout below only fits because the config is tiny.
    return pl.pallas_call(
        functools.partial(glm_layer_kernel, b, t),
        out_shape=jax.ShapeDtypeStruct(x2d.shape, x2d.dtype),
        in_specs=[_VMEM] * len(args),
        out_specs=_VMEM,
        input_output_aliases={0: 0},   # residual stream updated in place
    )(*args)


def glm_head(x2d, final_ln_w, output_w):
    return pl.pallas_call(
        glm_head_kernel,
        out_shape=jax.ShapeDtypeStruct((x2d.shape[0], output_w.shape[1]),
                                       jnp.float32),
        in_specs=[_VMEM] * 3,
        out_specs=_VMEM,
    )(x2d, final_ln_w, output_w)


# ---------------- glue (rotary tables, embedding) ----------------
def rotary_tables(b, t):
    # ChatGLM2 RotaryEmbedding(dim = kv_channels // 2)
    inv_freq = 1.0 / (10000.0 ** (jnp.arange(0, ROT_DIM, 2, dtype=jnp.float32)
                                  / ROT_DIM))
    pos = jnp.arange(t, dtype=jnp.float32)
    theta = jnp.outer(pos, inv_freq)               # [T, HALF_ROT]
    cos = jnp.cos(theta)
    sin = jnp.sin(theta)
    # tile over batch so the kernel indexes by flat token id (b-major, t-minor)
    return jnp.tile(cos, (b, 1)), jnp.tile(sin, (b, 1))


def _deinterleave_qkv(qkv_w, qkv_b):
    # Permute Q/K columns so that, per head, the rotary channels are laid out
    # [even pairs..., odd pairs...] instead of interleaved (x0,x1,x2,x3).
    # Scores q.k are invariant to a channel permutation applied identically to
    # Q and K, so the layer output is unchanged; a real checkpoint would need
    # the same one-time permutation applied to its query_key_value weights.
    head_perm = np.concatenate([np.arange(0, ROT_DIM, 2),
                                np.arange(1, ROT_DIM, 2),
                                np.arange(ROT_DIM, HEAD_DIM)])
    cols = [h * HEAD_DIM + head_perm for h in range(N_HEADS)]
    cols += [Q_SIZE + g * HEAD_DIM + head_perm for g in range(KV_GROUPS)]
    cols.append(np.arange(Q_SIZE + KV_SIZE, QKV_OUT))          # V untouched
    perm = np.concatenate(cols)
    return qkv_w[:, perm], qkv_b[perm]


# ---------------- parameters ----------------
def init_params(key):
    def normal(k, shape, scale=0.02):
        return (scale * jax.random.normal(k, shape)).astype(jnp.float32)

    def ln_w(k, n):
        return (1.0 + 0.01 * jax.random.normal(k, (1, n))).astype(jnp.float32)

    keys = jax.random.split(key, 3 + 7 * N_LAYERS)
    ki = iter(keys)
    params = {
        "embedding": normal(next(ki), (VOCAB, HIDDEN)).astype(jnp.bfloat16),
        "final_ln_w": ln_w(next(ki), HIDDEN),
        "output_w": normal(next(ki), (HIDDEN, VOCAB)).astype(jnp.bfloat16),
    }
    layers = []
    for _ in range(N_LAYERS):
        ln1 = ln_w(next(ki), HIDDEN)
        qkv_w = normal(next(ki), (HIDDEN, QKV_OUT))
        qkv_b = normal(next(ki), (QKV_OUT,))
        qkv_w, qkv_b = _deinterleave_qkv(qkv_w, qkv_b)
        layers.append({
            "ln1_w": ln1,
            "qkv_w": qkv_w.astype(jnp.bfloat16),               # [in, out]
            "qkv_b": qkv_b.reshape(1, -1).astype(jnp.float32),
            "dense_w": normal(next(ki), (HIDDEN, HIDDEN)).astype(jnp.bfloat16),
            "ln2_w": ln_w(next(ki), HIDDEN),
            "h_to_4h_w": normal(next(ki), (HIDDEN, 2 * FFN)).astype(jnp.bfloat16),
            "4h_to_h_w": normal(next(ki), (FFN, HIDDEN)).astype(jnp.bfloat16),
        })
    params["layers"] = layers
    return params


# ---------------- forward ----------------
def chatglm2_forward(params, input_ids):
    b, t = input_ids.shape
    cos_bt, sin_bt = rotary_tables(b, t)

    # embedding lookup (gather: plain-JAX glue)
    x = jnp.take(params["embedding"], input_ids, axis=0).astype(jnp.float32)
    x2d = x.reshape(b * t, HIDDEN)

    for lyr in params["layers"]:
        x2d = glm_layer(x2d, lyr, cos_bt, sin_bt, b, t)

    # final norm + output projection (get_input_logits=True -> all positions)
    logits = glm_head(x2d, params["final_ln_w"], params["output_w"])
    return logits.reshape(b, t, VOCAB)


# TODO(synk): checkpoint loading / torch.distributed scatter and the persistent
# fp16 KV-cache decode path of GPUChatGLM2 have no Pallas equivalent here; this
# runs a single full (prefill) forward with synthetic weights.

if __name__ == "__main__":
    key = jax.random.PRNGKey(0)
    pkey, ikey = jax.random.split(key)
    params = init_params(pkey)
    input_ids = jax.random.randint(ikey, (BATCH, SEQ), 0, VOCAB, dtype=jnp.int32)

    fwd = jax.jit(chatglm2_forward)
    logits = jax.block_until_ready(fwd(params, input_ids))

    assert logits.shape == (BATCH, SEQ, VOCAB)
    assert bool(jnp.all(jnp.isfinite(logits)))
    print("KERNEL_OK")
</pallas_src>

<mosaic_0001>
module attributes {stable_mosaic.version = 11 : i64} {
  func.func @glm_head_kernel(%arg0: memref<16x32xf32, #tpu.memory_space<vmem>>, %arg1: memref<1x32xf32, #tpu.memory_space<vmem>>, %arg2: memref<32x128xbf16, #tpu.memory_space<vmem>>, %arg3: memref<16x128xf32, #tpu.memory_space<vmem>>) attributes {dimension_semantics = [], scalar_prefetch = 0 : i64, scratch_operands = 0 : i64, tpu.core_type = #tpu.core_type<tc>} {
    %c0 = arith.constant 0 : index
    %c0_0 = arith.constant 0 : index
    %0 = vector.load %arg0[%c0, %c0_0] : memref<16x32xf32, #tpu.memory_space<vmem>>, vector<16x32xf32>
    %c0_1 = arith.constant 0 : index
    %c0_2 = arith.constant 0 : index
    %1 = vector.load %arg1[%c0_1, %c0_2] : memref<1x32xf32, #tpu.memory_space<vmem>>, vector<1x32xf32>
    %2 = arith.mulf %0, %0 : vector<16x32xf32>
    %cst = arith.constant dense<0.000000e+00> : vector<16xf32>
    %3 = vector.multi_reduction <add>, %2, %cst [1] : vector<16x32xf32> to vector<16xf32>
    %4 = vector.shape_cast %3 : vector<16xf32> to vector<16x1xf32>
    %cst_3 = arith.constant 3.200000e+01 : f32
    %5 = vector.broadcast %cst_3 : f32 to vector<16x1xf32>
    %6 = arith.divf %4, %5 : vector<16x1xf32>
    %cst_4 = arith.constant 9.99999974E-6 : f32
    %7 = vector.broadcast %cst_4 : f32 to vector<16x1xf32>
    %8 = arith.addf %6, %7 : vector<16x1xf32>
    %9 = math.rsqrt %8 : vector<16x1xf32>
    %10 = vector.broadcast %9 : vector<16x1xf32> to vector<16x32xf32>
    %11 = arith.mulf %0, %10 : vector<16x32xf32>
    %12 = vector.broadcast %1 : vector<1x32xf32> to vector<16x32xf32>
    %13 = arith.mulf %11, %12 : vector<16x32xf32>
    %14 = arith.truncf %13 : vector<16x32xf32> to vector<16x32xbf16>
    %c0_5 = arith.constant 0 : index
    %c0_6 = arith.constant 0 : index
    %15 = vector.load %arg2[%c0_5, %c0_6] : memref<32x128xbf16, #tpu.memory_space<vmem>>, vector<32x128xbf16>
    %cst_7 = arith.constant dense<0.000000e+00> : vector<16x128xf32>
    %16 = tpu.matmul %14, %15, %cst_7 {dimension_numbers = #tpu.dot_dimension_numbers<[1], [0], [0], [1], [0, 0, 1, 1], [], []>} : vector<16x32xbf16>, vector<32x128xbf16>, vector<16x128xf32> -> vector<16x128xf32>
    %c0_8 = arith.constant 0 : index
    %c0_9 = arith.constant 0 : index
    %17 = vector.load %arg3[%c0_8, %c0_9] : memref<16x128xf32, #tpu.memory_space<vmem>>, vector<16x128xf32>
    tpu.vector_store %arg3[%c0_8, %c0_9], %16 {strides = array<i32>} : memref<16x128xf32, #tpu.memory_space<vmem>>, vector<16x128xf32>,
    return
  }
}

module attributes {stable_mosaic.version = 11 : i64} {
  func.func @glm_layer_kernel(%arg0: memref<16x32xf32, #tpu.memory_space<vmem>>, %arg1: memref<1x32xf32, #tpu.memory_space<vmem>>, %arg2: memref<32x64xbf16, #tpu.memory_space<vmem>>, %arg3: memref<1x64xf32, #tpu.memory_space<vmem>>, %arg4: memref<32x32xbf16, #tpu.memory_space<vmem>>, %arg5: memref<1x32xf32, #tpu.memory_space<vmem>>, %arg6: memref<32x128xbf16, #tpu.memory_space<vmem>>, %arg7: memref<64x32xbf16, #tpu.memory_space<vmem>>, %arg8: memref<16x2xf32, #tpu.memory_space<vmem>>, %arg9: memref<16x2xf32, #tpu.memory_space<vmem>>, %arg10: memref<16x32xf32, #tpu.memory_space<vmem>>) attributes {dimension_semantics = [], scalar_prefetch = 0 : i64, scratch_operands = 0 : i64, tpu.core_type = #tpu.core_type<tc>} {
    %c0 = arith.constant 0 : index
    %c0_0 = arith.constant 0 : index
    %0 = vector.load %arg0[%c0, %c0_0] : memref<16x32xf32, #tpu.memory_space<vmem>>, vector<16x32xf32>
    %c0_1 = arith.constant 0 : index
    %c0_2 = arith.constant 0 : index
    %1 = vector.load %arg1[%c0_1, %c0_2] : memref<1x32xf32, #tpu.memory_space<vmem>>, vector<1x32xf32>
    %2 = arith.mulf %0, %0 : vector<16x32xf32>
    %cst = arith.constant dense<0.000000e+00> : vector<16xf32>
    %3 = vector.multi_reduction <add>, %2, %cst [1] : vector<16x32xf32> to vector<16xf32>
    %4 = vector.shape_cast %3 : vector<16xf32> to vector<16x1xf32>
    %cst_3 = arith.constant 3.200000e+01 : f32
    %5 = vector.broadcast %cst_3 : f32 to vector<16x1xf32>
    %6 = arith.divf %4, %5 : vector<16x1xf32>
    %cst_4 = arith.constant 9.99999974E-6 : f32
    %7 = vector.broadcast %cst_4 : f32 to vector<16x1xf32>
    %8 = arith.addf %6, %7 : vector<16x1xf32>
    %9 = math.rsqrt %8 : vector<16x1xf32>
    %10 = vector.broadcast %9 : vector<16x1xf32> to vector<16x32xf32>
    %11 = arith.mulf %0, %10 : vector<16x32xf32>
    %12 = vector.broadcast %1 : vector<1x32xf32> to vector<16x32xf32>
    %13 = arith.mulf %11, %12 : vector<16x32xf32>
    %14 = arith.truncf %13 : vector<16x32xf32> to vector<16x32xbf16>
    %c0_5 = arith.constant 0 : index
    %c0_6 = arith.constant 0 : index
    %15 = vector.load %arg2[%c0_5, %c0_6] : memref<32x64xbf16, #tpu.memory_space<vmem>>, vector<32x64xbf16>
    %cst_7 = arith.constant dense<0.000000e+00> : vector<16x64xf32>
    %16 = tpu.matmul %14, %15, %cst_7 {dimension_numbers = #tpu.dot_dimension_numbers<[1], [0], [0], [1], [0, 0, 1, 1], [], []>} : vector<16x32xbf16>, vector<32x64xbf16>, vector<16x64xf32> -> vector<16x64xf32>
    %c0_8 = arith.constant 0 : index
    %c0_9 = arith.constant 0 : index
    %17 = vector.load %arg3[%c0_8, %c0_9] : memref<1x64xf32, #tpu.memory_space<vmem>>, vector<1x64xf32>
    %18 = vector.broadcast %17 : vector<1x64xf32> to vector<16x64xf32>
    %19 = arith.addf %16, %18 : vector<16x64xf32>
    %c0_10 = arith.constant 0 : index
    %c0_11 = arith.constant 0 : index
    %20 = vector.load %arg8[%c0_10, %c0_11] : memref<16x2xf32, #tpu.memory_space<vmem>>, vector<16x2xf32>
    %c0_12 = arith.constant 0 : index
    %c0_13 = arith.constant 0 : index
    %21 = vector.load %arg9[%c0_12, %c0_13] : memref<16x2xf32, #tpu.memory_space<vmem>>, vector<16x2xf32>
    %22 = tpu.iota {dimensions = array<i32: 0>} : vector<8x8xi32>
    %23 = tpu.iota {dimensions = array<i32: 1>} : vector<8x8xi32>
    %24 = arith.cmpi sle, %23, %22 : vector<8x8xi32>
    %25 = vector.shape_cast %24 : vector<8x8xi1> to vector<1x8x8xi1>
    %26 = vector.extract_strided_slice %19 {offsets = [0, 32], sizes = [16, 8], strides = [1, 1]} : vector<16x64xf32> to vector<16x8xf32>
    %27 = vector.extract_strided_slice %26 {offsets = [0, 0], sizes = [16, 2], strides = [1, 1]} : vector<16x8xf32> to vector<16x2xf32>
    %28 = vector.extract_strided_slice %26 {offsets = [0, 2], sizes = [16, 2], strides = [1, 1]} : vector<16x8xf32> to vector<16x2xf32>
    %29 = vector.extract_strided_slice %26 {offsets = [0, 4], sizes = [16, 4], strides = [1, 1]} : vector<16x8xf32> to vector<16x4xf32>
    %30 = arith.mulf %27, %20 : vector<16x2xf32>
    %31 = arith.mulf %28, %21 : vector<16x2xf32>
    %32 = arith.subf %30, %31 : vector<16x2xf32>
    %33 = arith.mulf %28, %20 : vector<16x2xf32>
    %34 = arith.mulf %27, %21 : vector<16x2xf32>
    %35 = arith.addf %33, %34 : vector<16x2xf32>
    %36 = tpu.concatenate %32, %35, %29 in 1 : vector<16x2xf32>, vector<16x2xf32>, vector<16x4xf32> -> vector<16x8xf32>
    %37 = vector.extract_strided_slice %19 {offsets = [0, 48], sizes = [16, 8], strides = [1, 1]} : vector<16x64xf32> to vector<16x8xf32>
    %38 = vector.shape_cast %36 : vector<16x8xf32> to vector<2x8x8xf32>
    %39 = arith.truncf %38 : vector<2x8x8xf32> to vector<2x8x8xbf16>
    %40 = vector.shape_cast %37 : vector<16x8xf32> to vector<2x8x8xf32>
    %41 = arith.truncf %40 : vector<2x8x8xf32> to vector<2x8x8xbf16>
    %42 = vector.extract_strided_slice %19 {offsets = [0, 40], sizes = [16, 8], strides = [1, 1]} : vector<16x64xf32> to vector<16x8xf32>
    %43 = vector.extract_strided_slice %42 {offsets = [0, 0], sizes = [16, 2], strides = [1, 1]} : vector<16x8xf32> to vector<16x2xf32>
    %44 = vector.extract_strided_slice %42 {offsets = [0, 2], sizes = [16, 2], strides = [1, 1]} : vector<16x8xf32> to vector<16x2xf32>
    %45 = vector.extract_strided_slice %42 {offsets = [0, 4], sizes = [16, 4], strides = [1, 1]} : vector<16x8xf32> to vector<16x4xf32>
    %46 = arith.mulf %43, %20 : vector<16x2xf32>
    %47 = arith.mulf %44, %21 : vector<16x2xf32>
    %48 = arith.subf %46, %47 : vector<16x2xf32>
    %49 = arith.mulf %44, %20 : vector<16x2xf32>
    %50 = arith.mulf %43, %21 : vector<16x2xf32>
    %51 = arith.addf %49, %50 : vector<16x2xf32>
    %52 = tpu.concatenate %48, %51, %45 in 1 : vector<16x2xf32>, vector<16x2xf32>, vector<16x4xf32> -> vector<16x8xf32>
    %53 = vector.extract_strided_slice %19 {offsets = [0, 56], sizes = [16, 8], strides = [1, 1]} : vector<16x64xf32> to vector<16x8xf32>
    %54 = vector.shape_cast %52 : vector<16x8xf32> to vector<2x8x8xf32>
    %55 = arith.truncf %54 : vector<2x8x8xf32> to vector<2x8x8xbf16>
    %56 = vector.shape_cast %53 : vector<16x8xf32> to vector<2x8x8xf32>
    %57 = arith.truncf %56 : vector<2x8x8xf32> to vector<2x8x8xbf16>
    %58 = vector.extract_strided_slice %19 {offsets = [0, 0], sizes = [16, 8], strides = [1, 1]} : vector<16x64xf32> to vector<16x8xf32>
    %59 = vector.extract_strided_slice %58 {offsets = [0, 0], sizes = [16, 2], strides = [1, 1]} : vector<16x8xf32> to vector<16x2xf32>
    %60 = vector.extract_strided_slice %58 {offsets = [0, 2], sizes = [16, 2], strides = [1, 1]} : vector<16x8xf32> to vector<16x2xf32>
    %61 = vector.extract_strided_slice %58 {offsets = [0, 4], sizes = [16, 4], strides = [1, 1]} : vector<16x8xf32> to vector<16x4xf32>
    %62 = arith.mulf %59, %20 : vector<16x2xf32>
    %63 = arith.mulf %60, %21 : vector<16x2xf32>
    %64 = arith.subf %62, %63 : vector<16x2xf32>
    %65 = arith.mulf %60, %20 : vector<16x2xf32>
    %66 = arith.mulf %59, %21 : vector<16x2xf32>
    %67 = arith.addf %65, %66 : vector<16x2xf32>
    %68 = tpu.concatenate %64, %67, %61 in 1 : vector<16x2xf32>, vector<16x2xf32>, vector<16x4xf32> -> vector<16x8xf32>
    %69 = vector.shape_cast %68 : vector<16x8xf32> to vector<2x8x8xf32>
    %70 = arith.truncf %69 : vector<2x8x8xf32> to vector<2x8x8xbf16>
    "tpu.trace_start"() <{level = 10 : i32, message = "bqd,bkd->bqk"}> : () -> ()
    %cst_14 = arith.constant dense<0.000000e+00> : vector<2x8x8xf32>
    %71 = tpu.matmul %70, %39, %cst_14 {dimension_numbers = #tpu.dot_dimension_numbers<[2], [2], [1], [1], [0, 0, 0, 1, 1, 1], [0], [0]>} : vector<2x8x8xbf16>, vector<2x8x8xbf16>, vector<2x8x8xf32> -> vector<2x8x8xf32>
    "tpu.trace_stop"() : () -> ()
    %cst_15 = arith.constant 0.353553385 : f32
    %72 = vector.broadcast %cst_15 : f32 to vector<2x8x8xf32>
    %73 = arith.mulf %71, %72 : vector<2x8x8xf32>
    %cst_16 = arith.constant -1.000000e+30 : f32
    %74 = vector.shape_cast %25 : vector<1x8x8xi1> to vector<1x8x8xi1>
    %75 = vector.broadcast %74 : vector<1x8x8xi1> to vector<2x8x8xi1>
    %76 = vector.broadcast %cst_16 : f32 to vector<2x8x8xf32>
    %77 = arith.select %75, %73, %76 : vector<2x8x8xi1>, vector<2x8x8xf32>
    %cst_17 = arith.constant dense<0xFF800000> : vector<2x8xf32>
    %78 = vector.multi_reduction <maximumf>, %77, %cst_17 [2] : vector<2x8x8xf32> to vector<2x8xf32>
    %79 = vector.shape_cast %78 : vector<2x8xf32> to vector<2x8x1xf32>
    %80 = vector.broadcast %79 : vector<2x8x1xf32> to vector<2x8x8xf32>
    %81 = arith.subf %77, %80 : vector<2x8x8xf32>
    %82 = math.exp %81 : vector<2x8x8xf32>
    %cst_18 = arith.constant dense<0.000000e+00> : vector<2x8xf32>
    %83 = vector.multi_reduction <add>, %82, %cst_18 [2] : vector<2x8x8xf32> to vector<2x8xf32>
    %84 = vector.shape_cast %83 : vector<2x8xf32> to vector<2x8x1xf32>
    %85 = tpu.reciprocal %84 {approx = true} : vector<2x8x1xf32> -> vector<2x8x1xf32>
    %86 = vector.broadcast %85 : vector<2x8x1xf32> to vector<2x8x8xf32>
    %87 = arith.mulf %82, %86 : vector<2x8x8xf32>
    %88 = arith.truncf %87 : vector<2x8x8xf32> to vector<2x8x8xbf16>
    "tpu.trace_start"() <{level = 10 : i32, message = "bqk,bkd->bqd"}> : () -> ()
    %cst_19 = arith.constant dense<0.000000e+00> : vector<2x8x8xf32>
    %89 = tpu.matmul %88, %41, %cst_19 {dimension_numbers = #tpu.dot_dimension_numbers<[2], [1], [1], [2], [0, 0, 0, 1, 1, 2], [0], [0]>} : vector<2x8x8xbf16>, vector<2x8x8xbf16>, vector<2x8x8xf32> -> vector<2x8x8xf32>
    "tpu.trace_stop"() : () -> ()
    %90 = vector.shape_cast %89 : vector<2x8x8xf32> to vector<16x8xf32>
    %91 = vector.extract_strided_slice %19 {offsets = [0, 8], sizes = [16, 8], strides = [1, 1]} : vector<16x64xf32> to vector<16x8xf32>
    %92 = vector.extract_strided_slice %91 {offsets = [0, 0], sizes = [16, 2], strides = [1, 1]} : vector<16x8xf32> to vector<16x2xf32>
    %93 = vector.extract_strided_slice %91 {offsets = [0, 2], sizes = [16, 2], strides = [1, 1]} : vector<16x8xf32> to vector<16x2xf32>
    %94 = vector.extract_strided_slice %91 {offsets = [0, 4], sizes = [16, 4], strides = [1, 1]} : vector<16x8xf32> to vector<16x4xf32>
    %95 = arith.mulf %92, %20 : vector<16x2xf32>
    %96 = arith.mulf %93, %21 : vector<16x2xf32>
    %97 = arith.subf %95, %96 : vector<16x2xf32>
    %98 = arith.mulf %93, %20 : vector<16x2xf32>
    %99 = arith.mulf %92, %21 : vector<16x2xf32>
    %100 = arith.addf %98, %99 : vector<16x2xf32>
    %101 = tpu.concatenate %97, %100, %94 in 1 : vector<16x2xf32>, vector<16x2xf32>, vector<16x4xf32> -> vector<16x8xf32>
    %102 = vector.shape_cast %101 : vector<16x8xf32> to vector<2x8x8xf32>
    %103 = arith.truncf %102 : vector<2x8x8xf32> to vector<2x8x8xbf16>
    "tpu.trace_start"() <{level = 10 : i32, message = "bqd,bkd->bqk"}> : () -> ()
    %cst_20 = arith.constant dense<0.000000e+00> : vector<2x8x8xf32>
    %104 = tpu.matmul %103, %39, %cst_20 {dimension_numbers = #tpu.dot_dimension_numbers<[2], [2], [1], [1], [0, 0, 0, 1, 1, 1], [0], [0]>} : vector<2x8x8xbf16>, vector<2x8x8xbf16>, vector<2x8x8xf32> -> vector<2x8x8xf32>
    "tpu.trace_stop"() : () -> ()
    %cst_21 = arith.constant 0.353553385 : f32
    %105 = vector.broadcast %cst_21 : f32 to vector<2x8x8xf32>
    %106 = arith.mulf %104, %105 : vector<2x8x8xf32>
    %cst_22 = arith.constant -1.000000e+30 : f32
    %107 = vector.shape_cast %25 : vector<1x8x8xi1> to vector<1x8x8xi1>
    %108 = vector.broadcast %107 : vector<1x8x8xi1> to vector<2x8x8xi1>
    %109 = vector.broadcast %cst_22 : f32 to vector<2x8x8xf32>
    %110 = arith.select %108, %106, %109 : vector<2x8x8xi1>, vector<2x8x8xf32>
    %cst_23 = arith.constant dense<0xFF800000> : vector<2x8xf32>
    %111 = vector.multi_reduction <maximumf>, %110, %cst_23 [2] : vector<2x8x8xf32> to vector<2x8xf32>
    %112 = vector.shape_cast %111 : vector<2x8xf32> to vector<2x8x1xf32>
    %113 = vector.broadcast %112 : vector<2x8x1xf32> to vector<2x8x8xf32>
    %114 = arith.subf %110, %113 : vector<2x8x8xf32>
    %115 = math.exp %114 : vector<2x8x8xf32>
    %cst_24 = arith.constant dense<0.000000e+00> : vector<2x8xf32>
    %116 = vector.multi_reduction <add>, %115, %cst_24 [2] : vector<2x8x8xf32> to vector<2x8xf32>
    %117 = vector.shape_cast %116 : vector<2x8xf32> to vector<2x8x1xf32>
    %118 = tpu.reciprocal %117 {approx = true} : vector<2x8x1xf32> -> vector<2x8x1xf32>
    %119 = vector.broadcast %118 : vector<2x8x1xf32> to vector<2x8x8xf32>
    %120 = arith.mulf %115, %119 : vector<2x8x8xf32>
    %121 = arith.truncf %120 : vector<2x8x8xf32> to vector<2x8x8xbf16>
    "tpu.trace_start"() <{level = 10 : i32, message = "bqk,bkd->bqd"}> : () -> ()
    %cst_25 = arith.constant dense<0.000000e+00> : vector<2x8x8xf32>
    %122 = tpu.matmul %121, %41, %cst_25 {dimension_numbers = #tpu.dot_dimension_numbers<[2], [1], [1], [2], [0, 0, 0, 1, 1, 2], [0], [0]>} : vector<2x8x8xbf16>, vector<2x8x8xbf16>, vector<2x8x8xf32> -> vector<2x8x8xf32>
    "tpu.trace_stop"() : () -> ()
    %123 = vector.shape_cast %122 : vector<2x8x8xf32> to vector<16x8xf32>
    %124 = vector.extract_strided_slice %19 {offsets = [0, 16], sizes = [16, 8], strides = [1, 1]} : vector<16x64xf32> to vector<16x8xf32>
    %125 = vector.extract_strided_slice %124 {offsets = [0, 0], sizes = [16, 2], strides = [1, 1]} : vector<16x8xf32> to vector<16x2xf32>
    %126 = vector.extract_strided_slice %124 {offsets = [0, 2], sizes = [16, 2], strides = [1, 1]} : vector<16x8xf32> to vector<16x2xf32>
    %127 = vector.extract_strided_slice %124 {offsets = [0, 4], sizes = [16, 4], strides = [1, 1]} : vector<16x8xf32> to vector<16x4xf32>
    %128 = arith.mulf %125, %20 : vector<16x2xf32>
    %129 = arith.mulf %126, %21 : vector<16x2xf32>
    %130 = arith.subf %128, %129 : vector<16x2xf32>
    %131 = arith.mulf %126, %20 : vector<16x2xf32>
    %132 = arith.mulf %125, %21 : vector<16x2xf32>
    %133 = arith.addf %131, %132 : vector<16x2xf32>
    %134 = tpu.concatenate %130, %133, %127 in 1 : vector<16x2xf32>, vector<16x2xf32>, vector<16x4xf32> -> vector<16x8xf32>
    %135 = vector.shape_cast %134 : vector<16x8xf32> to vector<2x8x8xf32>
    %136 = arith.truncf %135 : vector<2x8x8xf32> to vector<2x8x8xbf16>
    "tpu.trace_start"() <{level = 10 : i32, message = "bqd,bkd->bqk"}> : () -> ()
    %cst_26 = arith.constant dense<0.000000e+00> : vector<2x8x8xf32>
    %137 = tpu.matmul %136, %55, %cst_26 {dimension_numbers = #tpu.dot_dimension_numbers<[2], [2], [1], [1], [0, 0, 0, 1, 1, 1], [0], [0]>} : vector<2x8x8xbf16>, vector<2x8x8xbf16>, vector<2x8x8xf32> -> vector<2x8x8xf32>
    "tpu.trace_stop"() : () -> ()
    %cst_27 = arith.constant 0.353553385 : f32
    %138 = vector.broadcast %cst_27 : f32 to vector<2x8x8xf32>
    %139 = arith.mulf %137, %138 : vector<2x8x8xf32>
    %cst_28 = arith.constant -1.000000e+30 : f32
    %140 = vector.shape_cast %25 : vector<1x8x8xi1> to vector<1x8x8xi1>
    %141 = vector.broadcast %140 : vector<1x8x8xi1> to vector<2x8x8xi1>
    %142 = vector.broadcast %cst_28 : f32 to vector<2x8x8xf32>
    %143 = arith.select %141, %139, %142 : vector<2x8x8xi1>, vector<2x8x8xf32>
    %cst_29 = arith.constant dense<0xFF800000> : vector<2x8xf32>
    %144 = vector.multi_reduction <maximumf>, %143, %cst_29 [2] : vector<2x8x8xf32> to vector<2x8xf32>
    %145 = vector.shape_cast %144 : vector<2x8xf32> to vector<2x8x1xf32>
    %146 = vector.broadcast %145 : vector<2x8x1xf32> to vector<2x8x8xf32>
    %147 = arith.subf %143, %146 : vector<2x8x8xf32>
    %148 = math.exp %147 : vector<2x8x8xf32>
    %cst_30 = arith.constant dense<0.000000e+00> : vector<2x8xf32>
    %149 = vector.multi_reduction <add>, %148, %cst_30 [2] : vector<2x8x8xf32> to vector<2x8xf32>
    %150 = vector.shape_cast %149 : vector<2x8xf32> to vector<2x8x1xf32>
    %151 = tpu.reciprocal %150 {approx = true} : vector<2x8x1xf32> -> vector<2x8x1xf32>
    %152 = vector.broadcast %151 : vector<2x8x1xf32> to vector<2x8x8xf32>
    %153 = arith.mulf %148, %152 : vector<2x8x8xf32>
    %154 = arith.truncf %153 : vector<2x8x8xf32> to vector<2x8x8xbf16>
    "tpu.trace_start"() <{level = 10 : i32, message = "bqk,bkd->bqd"}> : () -> ()
    %cst_31 = arith.constant dense<0.000000e+00> : vector<2x8x8xf32>
    %155 = tpu.matmul %154, %57, %cst_31 {dimension_numbers = #tpu.dot_dimension_numbers<[2], [1], [1], [2], [0, 0, 0, 1, 1, 2], [0], [0]>} : vector<2x8x8xbf16>, vector<2x8x8xbf16>, vector<2x8x8xf32> -> vector<2x8x8xf32>
    "tpu.trace_stop"() : () -> ()
    %156 = vector.shape_cast %155 : vector<2x8x8xf32> to vector<16x8xf32>
    %157 = vector.extract_strided_slice %19 {offsets = [0, 24], sizes = [16, 8], strides = [1, 1]} : vector<16x64xf32> to vector<16x8xf32>
    %158 = vector.extract_strided_slice %157 {offsets = [0, 0], sizes = [16, 2], strides = [1, 1]} : vector<16x8xf32> to vector<16x2xf32>
    %159 = vector.extract_strided_slice %157 {offsets = [0, 2], sizes = [16, 2], strides = [1, 1]} : vector<16x8xf32> to vector<16x2xf32>
    %160 = vector.extract_strided_slice %157 {offsets = [0, 4], sizes = [16, 4], strides = [1, 1]} : vector<16x8xf32> to vector<16x4xf32>
    %161 = arith.mulf %158, %20 : vector<16x2xf32>
    %162 = arith.mulf %159, %21 : vector<16x2xf32>
    %163 = arith.subf %161, %162 : vector<16x2xf32>
    %164 = arith.mulf %159, %20 : vector<16x2xf32>
    %165 = arith.mulf %158, %21 : vector<16x2xf32>
    %166 = arith.addf %164, %165 : vector<16x2xf32>
    %167 = tpu.concatenate %163, %166, %160 in 1 : vector<16x2xf32>, vector<16x2xf32>, vector<16x4xf32> -> vector<16x8xf32>
    %168 = vector.shape_cast %167 : vector<16x8xf32> to vector<2x8x8xf32>
    %169 = arith.truncf %168 : vector<2x8x8xf32> to vector<2x8x8xbf16>
    "tpu.trace_start"() <{level = 10 : i32, message = "bqd,bkd->bqk"}> : () -> ()
    %cst_32 = arith.constant dense<0.000000e+00> : vector<2x8x8xf32>
    %170 = tpu.matmul %169, %55, %cst_32 {dimension_numbers = #tpu.dot_dimension_numbers<[2], [2], [1], [1], [0, 0, 0, 1, 1, 1], [0], [0]>} : vector<2x8x8xbf16>, vector<2x8x8xbf16>, vector<2x8x8xf32> -> vector<2x8x8xf32>
    "tpu.trace_stop"() : () -> ()
    %cst_33 = arith.constant 0.353553385 : f32
    %171 = vector.broadcast %cst_33 : f32 to vector<2x8x8xf32>
    %172 = arith.mulf %170, %171 : vector<2x8x8xf32>
    %cst_34 = arith.constant -1.000000e+30 : f32
    %173 = vector.shape_cast %25 : vector<1x8x8xi1> to vector<1x8x8xi1>
    %174 = vector.broadcast %173 : vector<1x8x8xi1> to vector<2x8x8xi1>
    %175 = vector.broadcast %cst_34 : f32 to vector<2x8x8xf32>
    %176 = arith.select %174, %172, %175 : vector<2x8x8xi1>, vector<2x8x8xf32>
    %cst_35 = arith.constant dense<0xFF800000> : vector<2x8xf32>
    %177 = vector.multi_reduction <maximumf>, %176, %cst_35 [2] : vector<2x8x8xf32> to vector<2x8xf32>
    %178 = vector.shape_cast %177 : vector<2x8xf32> to vector<2x8x1xf32>
    %179 = vector.broadcast %178 : vector<2x8x1xf32> to vector<2x8x8xf32>
    %180 = arith.subf %176, %179 : vector<2x8x8xf32>
    %181 = math.exp %180 : vector<2x8x8xf32>
    %cst_36 = arith.constant dense<0.000000e+00> : vector<2x8xf32>
    %182 = vector.multi_reduction <add>, %181, %cst_36 [2] : vector<2x8x8xf32> to vector<2x8xf32>
    %183 = vector.shape_cast %182 : vector<2x8xf32> to vector<2x8x1xf32>
    %184 = tpu.reciprocal %183 {approx = true} : vector<2x8x1xf32> -> vector<2x8x1xf32>
    %185 = vector.broadcast %184 : vector<2x8x1xf32> to vector<2x8x8xf32>
    %186 = arith.mulf %181, %185 : vector<2x8x8xf32>
    %187 = arith.truncf %186 : vector<2x8x8xf32> to vector<2x8x8xbf16>
    "tpu.trace_start"() <{level = 10 : i32, message = "bqk,bkd->bqd"}> : () -> ()
    %cst_37 = arith.constant dense<0.000000e+00> : vector<2x8x8xf32>
    %188 = tpu.matmul %187, %57, %cst_37 {dimension_numbers = #tpu.dot_dimension_numbers<[2], [1], [1], [2], [0, 0, 0, 1, 1, 2], [0], [0]>} : vector<2x8x8xbf16>, vector<2x8x8xbf16>, vector<2x8x8xf32> -> vector<2x8x8xf32>
    "tpu.trace_stop"() : () -> ()
    %189 = vector.shape_cast %188 : vector<2x8x8xf32> to vector<16x8xf32>
    %190 = tpu.concatenate %90, %123, %156, %189 in 1 : vector<16x8xf32>, vector<16x8xf32>, vector<16x8xf32>, vector<16x8xf32> -> vector<16x32xf32>
    %191 = arith.truncf %190 : vector<16x32xf32> to vector<16x32xbf16>
    %c0_38 = arith.constant 0 : index
    %c0_39 = arith.constant 0 : index
    %192 = vector.load %arg4[%c0_38, %c0_39] : memref<32x32xbf16, #tpu.memory_space<vmem>>, vector<32x32xbf16>
    %cst_40 = arith.constant dense<0.000000e+00> : vector<16x32xf32>
    %193 = tpu.matmul %191, %192, %cst_40 {dimension_numbers = #tpu.dot_dimension_numbers<[1], [0], [0], [1], [0, 0, 1, 1], [], []>} : vector<16x32xbf16>, vector<32x32xbf16>, vector<16x32xf32> -> vector<16x32xf32>
    %194 = arith.addf %0, %193 : vector<16x32xf32>
    %c0_41 = arith.constant 0 : index
    %c0_42 = arith.constant 0 : index
    %195 = vector.load %arg5[%c0_41, %c0_42] : memref<1x32xf32, #tpu.memory_space<vmem>>, vector<1x32xf32>
    %196 = arith.mulf %194, %194 : vector<16x32xf32>
    %cst_43 = arith.constant dense<0.000000e+00> : vector<16xf32>
    %197 = vector.multi_reduction <add>, %196, %cst_43 [1] : vector<16x32xf32> to vector<16xf32>
    %198 = vector.shape_cast %197 : vector<16xf32> to vector<16x1xf32>
    %cst_44 = arith.constant 3.200000e+01 : f32
    %199 = vector.broadcast %cst_44 : f32 to vector<16x1xf32>
    %200 = arith.divf %198, %199 : vector<16x1xf32>
    %cst_45 = arith.constant 9.99999974E-6 : f32
    %201 = vector.broadcast %cst_45 : f32 to vector<16x1xf32>
    %202 = arith.addf %200, %201 : vector<16x1xf32>
    %203 = math.rsqrt %202 : vector<16x1xf32>
    %204 = vector.broadcast %203 : vector<16x1xf32> to vector<16x32xf32>
    %205 = arith.mulf %194, %204 : vector<16x32xf32>
    %206 = vector.broadcast %195 : vector<1x32xf32> to vector<16x32xf32>
    %207 = arith.mulf %205, %206 : vector<16x32xf32>
    %208 = arith.truncf %207 : vector<16x32xf32> to vector<16x32xbf16>
    %c0_46 = arith.constant 0 : index
    %c0_47 = arith.constant 0 : index
    %209 = vector.load %arg6[%c0_46, %c0_47] : memref<32x128xbf16, #tpu.memory_space<vmem>>, vector<32x128xbf16>
    %cst_48 = arith.constant dense<0.000000e+00> : vector<16x128xf32>
    %210 = tpu.matmul %208, %209, %cst_48 {dimension_numbers = #tpu.dot_dimension_numbers<[1], [0], [0], [1], [0, 0, 1, 1], [], []>} : vector<16x32xbf16>, vector<32x128xbf16>, vector<16x128xf32> -> vector<16x128xf32>
    %211 = vector.extract_strided_slice %210 {offsets = [0, 0], sizes = [16, 64], strides = [1, 1]} : vector<16x128xf32> to vector<16x64xf32>
    %212 = vector.extract_strided_slice %210 {offsets = [0, 64], sizes = [16, 64], strides = [1, 1]} : vector<16x128xf32> to vector<16x64xf32>
    %cst_49 = arith.constant 0.000000e+00 : f32
    %213 = vector.broadcast %cst_49 : f32 to vector<16x64xf32>
    %214 = arith.subf %213, %211 : vector<16x64xf32>
    %215 = math.exp %214 : vector<16x64xf32>
    %cst_50 = arith.constant 1.000000e+00 : f32
    %216 = vector.broadcast %cst_50 : f32 to vector<16x64xf32>
    %217 = arith.addf %216, %215 : vector<16x64xf32>
    %218 = tpu.reciprocal %217 {approx = true} : vector<16x64xf32> -> vector<16x64xf32>
    %219 = arith.mulf %211, %218 : vector<16x64xf32>
    %220 = arith.mulf %219, %212 : vector<16x64xf32>
    %221 = arith.truncf %220 : vector<16x64xf32> to vector<16x64xbf16>
    %c0_51 = arith.constant 0 : index
    %c0_52 = arith.constant 0 : index
    %222 = vector.load %arg7[%c0_51, %c0_52] : memref<64x32xbf16, #tpu.memory_space<vmem>>, vector<64x32xbf16>
    %cst_53 = arith.constant dense<0.000000e+00> : vector<16x32xf32>
    %223 = tpu.matmul %221, %222, %cst_53 {dimension_numbers = #tpu.dot_dimension_numbers<[1], [0], [0], [1], [0, 0, 1, 1], [], []>} : vector<16x64xbf16>, vector<64x32xbf16>, vector<16x32xf32> -> vector<16x32xf32>
    %224 = arith.addf %194, %223 : vector<16x32xf32>
    %c0_54 = arith.constant 0 : index
    %c0_55 = arith.constant 0 : index
    %225 = vector.load %arg10[%c0_54, %c0_55] : memref<16x32xf32, #tpu.memory_space<vmem>>, vector<16x32xf32>
    tpu.vector_store %arg10[%c0_54, %c0_55], %224 {strides = array<i32>} : memref<16x32xf32, #tpu.memory_space<vmem>>, vector<16x32xf32>,
    return
  }
}

</mosaic_0001>

<llo_original>
// kernel: chatglm2_forward.5
$region0: #{chatglm2_forward.5}
  #allocation0 [shape = 'u32[]', space=smem, size = 0x4, offset = 0x4, fixed_abs, tag = 'smem constant byte address 0x4 - core index']
  #allocation1 [shape = 'u32[144,128]{1,0:T(1,128)}', space=vmem, size = 0x12000, scoped, tag = 'internal scratch']
  %s0 = inlined_call_operand.vmem [shape: f32[16,32], index: 0, kind: input, shape index: {}]
  %s1 = inlined_call_operand.vmem [shape: f32[1,32], index: 1, kind: input, shape index: {}]
  %s2 = inlined_call_operand.vmem [shape: bf16[32,128], index: 2, kind: input, shape index: {}]
  %s3 = inlined_call_operand.hbm [shape: f32[16,128], index: 3, kind: output, shape index: {}]
  %s4 = sld [smem:[#allocation0]]
  $region22: #{chatglm2_forward.5} parent=0
    _
  %s6 = ssub.s32 1, %s4
  %s7 = scalar_select 0, %s6, %s4
  $region1: #{chatglm2_forward.5} parent=0
    #allocation2 [shape = 'u8[8192]{0}', space=vmem, size = 0x2000, scoped, tag = 'output window, operand 0, single buffered']
    #allocation3 [shape = 's32[1]{0}', space=sflag, size = 0x4, scoped, tag = 'scoped memory for chatglm2_forward.5']
    %8 = vsyncpa [#allocation3], 0
    // Predicated region
    $region2: #{chatglm2_forward.5} parent=1 // pred_check
      _
    $region3: #{chatglm2_forward.5} parent=1 // pred_check_branch
      %10 = sbr.rel (0) target = $region5
    $region4: #{chatglm2_forward.5} parent=1 // pred_region
      _
    $region5: #{chatglm2_forward.5} parent=1 // pred_fallthru
      _
    // Predicated region
    $region6: #{chatglm2_forward.5} parent=1 // pred_check
      _
    $region7: #{chatglm2_forward.5} parent=1 // pred_check_branch
      %12 = sbr.rel (0) target = $region9
    $region8: #{chatglm2_forward.5} parent=1 // pred_region
      _
    $region9: #{chatglm2_forward.5} parent=1 // pred_fallthru
      _
    // Predicated region
    $region10: #{chatglm2_forward.5} parent=1 // pred_check
      _
    $region11: #{chatglm2_forward.5} parent=1 // pred_check_branch
      %14 = sbr.rel (0) target = $region13
    $region12: #{chatglm2_forward.5} parent=1 // pred_region
      _
    $region13: #{chatglm2_forward.5} parent=1 // pred_fallthru
      _
    %v16 = vld [vmem:[%s0] sm:$0xff]
    %v17 = vld [vmem:[%s0 + $0x8] sm:$0xff]
    %v18 = vld [vmem:[%s1] sm:$0x1]
    %v19 = vmul.f32 %v16, %v16
    %v20 = vmul.f32 %v17, %v17
    %vm21 = vcmask 261120
    %v22 = vsel %vm21, %v19, 0.0
    %23 = vadd.xlane.f32.xlu0 %v22
    %v24 = vpop.xlane.xlu0 %23
    %v25 = vsel %vm21, %v20, 0.0
    %26 = vadd.xlane.f32.xlu0 %v25
    %v27 = vpop.xlane.xlu0 %26
    %v28 = vrcp.pop 32.0
    %v29 = vmul.f32 %v24, %v28
    %v30 = vmul.f32 %v27, %v28
    %v31 = vadd.f32 %v29, 1e-05
    %v32 = vadd.f32 %v30, 1e-05
    %v33 = vrsqrt.pop %v31
    %v34 = vrsqrt.pop %v32
    %v35 = vmul.f32 %v16, %v33
    %v36 = vmul.f32 %v17, %v34
    %v38 = vlaneseq
    %v39 = vshrl.u32 %v38, 7
    %v40 = vsub.s32 0, %v39
    %v41 = vrot.slane %v18, %v40
    %v43 = vmul.f32 %v35, %v41
    %v44 = vmul.f32 %v36, %v41
    %v45 = vpack.c.bf16 %v44, %v43
    %v46 = vld [vmem:[%s2] sm:$0xf]
    %v47 = vld [vmem:[%s2 + $0x4] sm:$0xf]
    %v48 = vld [vmem:[%s2 + $0x8] sm:$0xf]
    %v49 = vld [vmem:[%s2 + $0xc] sm:$0xf]
    %v54 = vunpack.c.l.b16 %v46
    %v55 = vunpack.c.l.b16 %v47
    %v56 = vunpack.c.l.b16 %v48
    %v57 = vunpack.c.l.b16 %v49
    %v58 = vpack.c.b16 %v55, %v54
    %v59 = vpack.c.b16 %v57, %v56
    %v63 = vsel %vm21, %v45, 0
    %65 = vmatprep.subr.bf16.mxu0 0
    %66 = vmatpush1.bf16.msra.mxu0 0
    %67 = vmatprep.subr.bf16.mxu0 0
    %68 = vmatpush1.bf16.msra.mxu0 0
    %69 = vmatprep.subr.bf16.mxu0 0
    %70 = vmatpush1.bf16.msra.mxu0 0
    %71 = vmatprep.subr.bf16.mxu0 0
    %72 = vmatpush1.bf16.msra.mxu0 0
    %73 = vmatprep.subr.bf16.mxu0 0
    %74 = vmatpush1.bf16.msra.mxu0 0
    %75 = vmatprep.subr.bf16.mxu0 0
    %76 = vmatpush1.bf16.msra.mxu0 0
    %77 = vmatprep.subr.bf16.mxu0 0
    %78 = vmatpush1.bf16.msra.mxu0 %v59
    %79 = vmatprep.subr.bf16.mxu0 0
    %80 = vmatpush1.bf16.msra.mxu0 %v58
    %81 = vmatprep.subr.bf16.mxu0 0
    %82 = vmatpush2.bf16.msra.mxu0 0
    %83 = vmatprep.subr.bf16.mxu0 0
    %84 = vmatpush2.bf16.msra.mxu0 0
    %85 = vmatprep.subr.bf16.mxu0 0
    %86 = vmatpush2.bf16.msra.mxu0 0
    %87 = vmatprep.subr.bf16.mxu0 0
    %88 = vmatpush2.bf16.msra.mxu0 0
    %89 = vmatprep.subr.bf16.mxu0 0
    %90 = vmatpush2.bf16.msra.mxu0 0
    %91 = vmatprep.subr.bf16.mxu0 0
    %92 = vmatpush2.bf16.msra.mxu0 0
    %93 = vmatprep.subr.bf16.mxu0 0
    %94 = vmatpush2.bf16.msra.mxu0 0
    %95 = vmatprep.subr.bf16.mxu0 0
    %96 = vmatpush2.bf16.msra.mxu0 0
    %97 = vmatprep.mubr.bf16.mxu0 0
    %98 = vmatmul.mubr.bf16.gmra.mxu0 %v63
    %v99 = vpop.f32.mrf.mxu0
    %v100 = vadd.f32 0.0, %v99
    %v101 = vpop.f32.mrf.mxu0
    %v102 = vpop.f32.mrf.mxu0
    %v103 = vadd.f32 0.0, %v102
    %v104 = vpop.f32.mrf.mxu0
    %105 = vdwg.mxu0
    %106 = vst [vmem:[#allocation2] sm:$0xff] %v100
    %107 = vst [vmem:[#allocation2 + $0x8] sm:$0xff] %v103
    // Predicated region
    $region14: #{chatglm2_forward.5} parent=1 // pred_check
      _
    $region15: #{chatglm2_forward.5} parent=1 // pred_check_branch
      %109 = sbr.rel (0) target = $region17
    $region16: #{chatglm2_forward.5} parent=1 // pred_region
      %s111 = ssub.s32 256, 256
      %112 = vsyncadd [#allocation3], %s111
      %s113 = sshll.u32 [#allocation2], 4
      %s114 = int_to_ptr.vmem [resolvable:$true] %s113
      %119 = dma.vmem_to_hbm [thread:$0]  %s114, 256, %s3, [#allocation3], 128, 128, 8
    $region17: #{chatglm2_forward.5} parent=1 // pred_fallthru
      _
    // Predicated region
    $region18: #{chatglm2_forward.5} parent=1 // pred_check
      _
    $region19: #{chatglm2_forward.5} parent=1 // pred_check_branch
      %121 = sbr.rel (0) target = $region21
    $region20: #{chatglm2_forward.5} parent=1 // pred_region
      %122 = dma.done [#allocation3], 256
    $region21: #{chatglm2_forward.5} parent=1 // pred_fallthru
      _
    %123 = vsyncpa [#allocation3], 1

// kernel: chatglm2_forward.3
$region0: #{chatglm2_forward.3}
  #allocation0 [shape = 'u32[]', space=smem, size = 0x4, offset = 0x4, fixed_abs, tag = 'smem constant byte address 0x4 - core index']
  #allocation1 [shape = 'u32[144,128]{1,0:T(1,128)}', space=vmem, size = 0x12000, scoped, tag = 'internal scratch']
  %s0 = inlined_call_operand.vmem [shape: f32[16,32], index: 0, kind: input, shape index: {}, may-alias: {0,10}]
  %s1 = inlined_call_operand.vmem [shape: f32[1,32], index: 1, kind: input, shape index: {}]
  %s2 = inlined_call_operand.vmem [shape: bf16[32,64], index: 2, kind: input, shape index: {}]
  %s3 = inlined_call_operand.vmem [shape: f32[1,64], index: 3, kind: input, shape index: {}]
  %s4 = inlined_call_operand.vmem [shape: bf16[32,32], index: 4, kind: input, shape index: {}]
  %s5 = inlined_call_operand.vmem [shape: f32[1,32], index: 5, kind: input, shape index: {}]
  %s6 = inlined_call_operand.vmem [shape: bf16[32,128], index: 6, kind: input, shape index: {}]
  %s7 = inlined_call_operand.vmem [shape: bf16[64,32], index: 7, kind: input, shape index: {}]
  %s8 = inlined_call_operand.vmem [shape: f32[16,2], index: 8, kind: input, shape index: {}]
  %s9 = inlined_call_operand.vmem [shape: f32[16,2], index: 9, kind: input, shape index: {}]
  %s10 = inlined_call_operand.vmem [shape: f32[16,32], index: 10, kind: output, shape index: {}, may-alias: {0,10}]
  %s11 = sld [smem:[#allocation0]]
  $region50: #{chatglm2_forward.3} parent=0
    _
  %s13 = ssub.s32 1, %s11
  %s14 = scalar_select 0, %s13, %s11
  // Predicated region
  $region2: #{chatglm2_forward.3} parent=0 // pred_check
    _
  $region3: #{chatglm2_forward.3} parent=0 // pred_check_branch
    %16 = sbr.rel (0) target = $region5
  $region4: #{chatglm2_forward.3} parent=0 // pred_region
    _
  $region5: #{chatglm2_forward.3} parent=0 // pred_fallthru
    _
  // Predicated region
  $region6: #{chatglm2_forward.3} parent=0 // pred_check
    _
  $region7: #{chatglm2_forward.3} parent=0 // pred_check_branch
    %18 = sbr.rel (0) target = $region9
  $region8: #{chatglm2_forward.3} parent=0 // pred_region
    _
  $region9: #{chatglm2_forward.3} parent=0 // pred_fallthru
    _
  // Predicated region
  $region10: #{chatglm2_forward.3} parent=0 // pred_check
    _
  $region11: #{chatglm2_forward.3} parent=0 // pred_check_branch
    %20 = sbr.rel (0) target = $region13
  $region12: #{chatglm2_forward.3} parent=0 // pred_region
    _
  $region13: #{chatglm2_forward.3} parent=0 // pred_fallthru
    _
  // Predicated region
  $region14: #{chatglm2_forward.3} parent=0 // pred_check
    _
  $region15: #{chatglm2_forward.3} parent=0 // pred_check_branch
    %22 = sbr.rel (0) target = $region17
  $region16: #{chatglm2_forward.3} parent=0 // pred_region
    _
  $region17: #{chatglm2_forward.3} parent=0 // pred_fallthru
    _
  // Predicated region
  $region18: #{chatglm2_forward.3} parent=0 // pred_check
    _
  $region19: #{chatglm2_forward.3} parent=0 // pred_check_branch
    %24 = sbr.rel (0) target = $region21
  $region20: #{chatglm2_forward.3} parent=0 // pred_region
    _
  $region21: #{chatglm2_forward.3} parent=0 // pred_fallthru
    _
  // Predicated region
  $region22: #{chatglm2_forward.3} parent=0 // pred_check
    _
  $region23: #{chatglm2_forward.3} parent=0 // pred_check_branch
    %26 = sbr.rel (0) target = $region25
  $region24: #{chatglm2_forward.3} parent=0 // pred_region
    _
  $region25: #{chatglm2_forward.3} parent=0 // pred_fallthru
    _
  // Predicated region
  $region26: #{chatglm2_forward.3} parent=0 // pred_check
    _
  $region27: #{chatglm2_forward.3} parent=0 // pred_check_branch
    %28 = sbr.rel (0) target = $region29
  $region28: #{chatglm2_forward.3} parent=0 // pred_region
    _
  $region29: #{chatglm2_forward.3} parent=0 // pred_fallthru
    _
  // Predicated region
  $region30: #{chatglm2_forward.3} parent=0 // pred_check
    _
  $region31: #{chatglm2_forward.3} parent=0 // pred_check_branch
    %30 = sbr.rel (0) target = $region33
  $region32: #{chatglm2_forward.3} parent=0 // pred_region
    _
  $region33: #{chatglm2_forward.3} parent=0 // pred_fallthru
    _
  // Predicated region
  $region34: #{chatglm2_forward.3} parent=0 // pred_check
    _
  $region35: #{chatglm2_forward.3} parent=0 // pred_check_branch
    %32 = sbr.rel (0) target = $region37
  $region36: #{chatglm2_forward.3} parent=0 // pred_region
    _
  $region37: #{chatglm2_forward.3} parent=0 // pred_fallthru
    _
  // Predicated region
  $region38: #{chatglm2_forward.3} parent=0 // pred_check
    _
  $region39: #{chatglm2_forward.3} parent=0 // pred_check_branch
    %34 = sbr.rel (0) target = $region41
  $region40: #{chatglm2_forward.3} parent=0 // pred_region
    _
  $region41: #{chatglm2_forward.3} parent=0 // pred_fallthru
    _
  %v36 = vld [vmem:[%s0] sm:$0xff]
  %v37 = vld [vmem:[%s0 + $0x8] sm:$0xff]
  %v38 = vld [vmem:[%s1] sm:$0x1]
  %v39 = vmul.f32 %v36, %v36
  %v40 = vmul.f32 %v37, %v37
  %vm41 = vcmask 261120
  %v42 = vsel %vm41, %v39, 0.0
  %43 = vadd.xlane.f32.xlu0 %v42
  %v44 = vpop.xlane.xlu0 %43
  %v45 = vsel %vm41, %v40, 0.0
  %46 = vadd.xlane.f32.xlu0 %v45
  %v47 = vpop.xlane.xlu0 %46
  %v48 = vrcp.pop 32.0
  %v49 = vmul.f32 %v44, %v48
  %v50 = vmul.f32 %v47, %v48
  %v51 = vadd.f32 %v49, 1e-05
  %v52 = vadd.f32 %v50, 1e-05
  %v53 = vrsqrt.pop %v51
  %v54 = vrsqrt.pop %v52
  %v55 = vmul.f32 %v36, %v53
  %v56 = vmul.f32 %v37, %v54
  %v58 = vlaneseq
  %v59 = vshrl.u32 %v58, 7
  %v60 = vsub.s32 0, %v59
  %v61 = vrot.slane %v38, %v60
  %v63 = vmul.f32 %v55, %v61
  %v64 = vmul.f32 %v56, %v61
  %v65 = vpack.c.bf16 %v64, %v63
  %v66 = vld [vmem:[%s2] sm:$0xf]
  %v67 = vld [vmem:[%s2 + $0x4] sm:$0xf]
  %v68 = vld [vmem:[%s2 + $0x8] sm:$0xf]
  %v69 = vld [vmem:[%s2 + $0xc] sm:$0xf]
  %v70 = vld [vmem:[%s3] sm:$0x1]
  %v72 = vlaneseq
  %v73 = vshrl.u32 %v72, 7
  %v74 = vsub.s32 0, %v73
  %v75 = vrot.slane %v70, %v74
  %v81 = vunpack.c.l.b16 %v66
  %v82 = vunpack.c.l.b16 %v67
  %v83 = vunpack.c.l.b16 %v68
  %v84 = vunpack.c.l.b16 %v69
  %v85 = vpack.c.b16 %v82, %v81
  %v86 = vpack.c.b16 %v84, %v83
  %v90 = vsel %vm41, %v65, 0
  %92 = vmatprep.subr.bf16.mxu0 0
  %93 = vmatpush1.bf16.msra.mxu0 0
  %94 = vmatprep.subr.bf16.mxu0 0
  %95 = vmatpush1.bf16.msra.mxu0 0
  %96 = vmatprep.subr.bf16.mxu0 0
  %97 = vmatpush1.bf16.msra.mxu0 0
  %98 = vmatprep.subr.bf16.mxu0 0
  %99 = vmatpush1.bf16.msra.mxu0 0
  %100 = vmatprep.subr.bf16.mxu0 0
  %101 = vmatpush1.bf16.msra.mxu0 0
  %102 = vmatprep.subr.bf16.mxu0 0
  %103 = vmatpush1.bf16.msra.mxu0 0
  %104 = vmatprep.subr.bf16.mxu0 0
  %105 = vmatpush1.bf16.msra.mxu0 %v86
  %106 = vmatprep.subr.bf16.mxu0 0
  %107 = vmatpush1.bf16.msra.mxu0 %v85
  %108 = vmatprep.subr.bf16.mxu0 0
  %109 = vmatpush2.bf16.msra.mxu0 0
  %110 = vmatprep.subr.bf16.mxu0 0
  %111 = vmatpush2.bf16.msra.mxu0 0
  %112 = vmatprep.subr.bf16.mxu0 0
  %113 = vmatpush2.bf16.msra.mxu0 0
  %114 = vmatprep.subr.bf16.mxu0 0
  %115 = vmatpush2.bf16.msra.mxu0 0
  %116 = vmatprep.subr.bf16.mxu0 0
  %117 = vmatpush2.bf16.msra.mxu0 0
  %118 = vmatprep.subr.bf16.mxu0 0
  %119 = vmatpush2.bf16.msra.mxu0 0
  %120 = vmatprep.subr.bf16.mxu0 0
  %121 = vmatpush2.bf16.msra.mxu0 0
  %122 = vmatprep.subr.bf16.mxu0 0
  %123 = vmatpush2.bf16.msra.mxu0 0
  %124 = vmatprep.mubr.bf16.mxu0 0
  %125 = vmatmul.mubr.bf16.gmra.mxu0 %v90
  %v126 = vpop.f32.mrf.mxu0
  %v127 = vadd.f32 %v75, %v126
  %v128 = vpop.f32.mrf.mxu0
  %v129 = vpop.f32.mrf.mxu0
  %v130 = vadd.f32 %v75, %v129
  %v131 = vpop.f32.mrf.mxu0
  %132 = vdwg.mxu0
  %v133 = vld [vmem:[%s8] sm:$0xff]
  %v134 = vld [vmem:[%s8 + $0x8] sm:$0xff]
  %v135 = vld [vmem:[%s9] sm:$0xff]
  %v136 = vld [vmem:[%s9 + $0x8] sm:$0xff]
  %v137 = vlaneseq
  %v138 = vshrl.u32 %v137, 7
  %v139 = vlaneseq
  %v140 = vand.u32 %v139, 127
  %vm141 = vcmp.le.s32.totalorder %v140, %v138
  %144 = vrot.lane.b32.xlu0 %v133, 32
  %v145 = vpop.permute.xlu0 %144
  %146 = vrot.lane.b32.xlu0 %v134, 32
  %v147 = vpop.permute.xlu0 %146
  %v150 = vmul.f32 %v127, %v145
  %v151 = vmul.f32 %v130, %v147
  %154 = vrot.lane.b32.xlu0 %v135, 34
  %v155 = vpop.permute.xlu0 %154
  %156 = vrot.lane.b32.xlu0 %v136, 34
  %v157 = vpop.permute.xlu0 %156
  %v160 = vmul.f32 %v127, %v155
  %v161 = vmul.f32 %v130, %v157
  %164 = vrot.lane.b32.xlu0 %v160, 126
  %v165 = vpop.permute.xlu0 %164
  %166 = vrot.lane.b32.xlu0 %v161, 126
  %v167 = vpop.permute.xlu0 %166
  %v170 = vsub.f32 %v150, %v165
  %v171 = vsub.f32 %v151, %v167
  %172 = vrot.lane.b32.xlu0 %v133, 34
  %v173 = vpop.permute.xlu0 %172
  %174 = vrot.lane.b32.xlu0 %v134, 34
  %v175 = vpop.permute.xlu0 %174
  %v178 = vmul.f32 %v127, %v173
  %v179 = vmul.f32 %v130, %v175
  %180 = vrot.lane.b32.xlu0 %v135, 32
  %v181 = vpop.permute.xlu0 %180
  %182 = vrot.lane.b32.xlu0 %v136, 32
  %v183 = vpop.permute.xlu0 %182
  %v186 = vmul.f32 %v127, %v181
  %v187 = vmul.f32 %v130, %v183
  %190 = vrot.lane.b32.xlu0 %v186, 2
  %v191 = vpop.permute.xlu0 %190
  %192 = vrot.lane.b32.xlu0 %v187, 2
  %v193 = vpop.permute.xlu0 %192
  %v196 = vadd.f32 %v178, %v191
  %v197 = vadd.f32 %v179, %v193
  %200 = vrot.lane.b32.xlu0 %v170, 96
  %v201 = vpop.permute.xlu0 %200
  %202 = vrot.lane.b32.xlu0 %v171, 96
  %v203 = vpop.permute.xlu0 %202
  %208 = vrot.lane.b32.xlu0 %v196, 96
  %v209 = vpop.permute.xlu0 %208
  %210 = vrot.lane.b32.xlu0 %v197, 96
  %v211 = vpop.permute.xlu0 %210
  %216 = vrot.lane.b32.xlu0 %v127, 96
  %v217 = vpop.permute.xlu0 %216
  %218 = vrot.lane.b32.xlu0 %v130, 96
  %v219 = vpop.permute.xlu0 %218
  %vm222 = vcmask 15360
  %v223 = vsel %vm222, %v201, %v209
  %v224 = vsel %vm222, %v203, %v211
  %vm225 = vcmask 31744
  %v226 = vsel %vm225, %v223, %v217
  %v227 = vsel %vm225, %v224, %v219
  %v228 = vpack.c.bf16 %v226, %v226
  %v229 = vpack.c.bf16 %v227, %v227
  %v230 = vpack.c.bf16 %v127, %v127
  %v231 = vpack.c.bf16 %v130, %v130
  %232 = vrot.lane.b32.xlu0 %v133, 40
  %v233 = vpop.permute.xlu0 %232
  %234 = vrot.lane.b32.xlu0 %v134, 40
  %v235 = vpop.permute.xlu0 %234
  %v238 = vmul.f32 %v127, %v233
  %v239 = vmul.f32 %v130, %v235
  %240 = vrot.lane.b32.xlu0 %v135, 42
  %v241 = vpop.permute.xlu0 %240
  %242 = vrot.lane.b32.xlu0 %v136, 42
  %v243 = vpop.permute.xlu0 %242
  %v246 = vmul.f32 %v127, %v241
  %v247 = vmul.f32 %v130, %v243
  %250 = vrot.lane.b32.xlu0 %v246, 126
  %v251 = vpop.permute.xlu0 %250
  %252 = vrot.lane.b32.xlu0 %v247, 126
  %v253 = vpop.permute.xlu0 %252
  %v256 = vsub.f32 %v238, %v251
  %v257 = vsub.f32 %v239, %v253
  %258 = vrot.lane.b32.xlu0 %v133, 42
  %v259 = vpop.permute.xlu0 %258
  %260 = vrot.lane.b32.xlu0 %v134, 42
  %v261 = vpop.permute.xlu0 %260
  %v264 = vmul.f32 %v127, %v259
  %v265 = vmul.f32 %v130, %v261
  %266 = vrot.lane.b32.xlu0 %v135, 40
  %v267 = vpop.permute.xlu0 %266
  %268 = vrot.lane.b32.xlu0 %v136, 40
  %v269 = vpop.permute.xlu0 %268
  %v272 = vmul.f32 %v127, %v267
  %v273 = vmul.f32 %v130, %v269
  %276 = vrot.lane.b32.xlu0 %v272, 2
  %v277 = vpop.permute.xlu0 %276
  %278 = vrot.lane.b32.xlu0 %v273, 2
  %v279 = vpop.permute.xlu0 %278
  %v282 = vadd.f32 %v264, %v277
  %v283 = vadd.f32 %v265, %v279
  %286 = vrot.lane.b32.xlu0 %v256, 88
  %v287 = vpop.permute.xlu0 %286
  %288 = vrot.lane.b32.xlu0 %v257, 88
  %v289 = vpop.permute.xlu0 %288
  %294 = vrot.lane.b32.xlu0 %v282, 88
  %v295 = vpop.permute.xlu0 %294
  %296 = vrot.lane.b32.xlu0 %v283, 88
  %v297 = vpop.permute.xlu0 %296
  %300 = vrot.lane.b32.xlu0 %v127, 88
  %v301 = vpop.permute.xlu0 %300
  %302 = vrot.lane.b32.xlu0 %v130, 88
  %v303 = vpop.permute.xlu0 %302
  %v306 = vsel %vm222, %v287, %v295
  %v307 = vsel %vm222, %v289, %v297
  %v308 = vsel %vm225, %v306, %v301
  %v309 = vsel %vm225, %v307, %v303
  %v310 = vpack.c.bf16 %v308, %v308
  %v311 = vpack.c.bf16 %v309, %v309
  %v312 = vmul.f32 %v127, %v133
  %v313 = vmul.f32 %v130, %v134
  %314 = vrot.lane.b32.xlu0 %v135, 2
  %v315 = vpop.permute.xlu0 %314
  %316 = vrot.lane.b32.xlu0 %v136, 2
  %v317 = vpop.permute.xlu0 %316
  %v320 = vmul.f32 %v127, %v315
  %v321 = vmul.f32 %v130, %v317
  %324 = vrot.lane.b32.xlu0 %v320, 126
  %v325 = vpop.permute.xlu0 %324
  %326 = vrot.lane.b32.xlu0 %v321, 126
  %v327 = vpop.permute.xlu0 %326
  %v330 = vsub.f32 %v312, %v325
  %v331 = vsub.f32 %v313, %v327
  %332 = vrot.lane.b32.xlu0 %v133, 2
  %v333 = vpop.permute.xlu0 %332
  %334 = vrot.lane.b32.xlu0 %v134, 2
  %v335 = vpop.permute.xlu0 %334
  %v338 = vmul.f32 %v127, %v333
  %v339 = vmul.f32 %v130, %v335
  %v340 = vmul.f32 %v127, %v135
  %v341 = vmul.f32 %v130, %v136
  %344 = vrot.lane.b32.xlu0 %v340, 2
  %v345 = vpop.permute.xlu0 %344
  %346 = vrot.lane.b32.xlu0 %v341, 2
  %v347 = vpop.permute.xlu0 %346
  %v350 = vadd.f32 %v338, %v345
  %v351 = vadd.f32 %v339, %v347
  %v352 = vsel %vm222, %v330, %v350
  %v353 = vsel %vm222, %v331, %v351
  %v354 = vsel %vm225, %v352, %v127
  %v355 = vsel %vm225, %v353, %v130
  %v356 = vpack.c.bf16 %v354, %v354
  %v357 = vpack.c.bf16 %v355, %v355
  %vm358 = vcmask 64512
  %v360 = vsel %vm358, %v356, 0
  %v363 = vsel %vm358, %v228, 0
  %365 = vmatprep.subr.bf16.mxu0 0
  %366 = vmatpush1.bf16.xpose.msra.mxu0 0
  %367 = vmatprep.subr.bf16.mxu0 0
  %368 = vmatpush1.bf16.xpose.msra.mxu0 0
  %369 = vmatprep.subr.bf16.mxu0 0
  %370 = vmatpush1.bf16.xpose.msra.mxu0 0
  %371 = vmatprep.subr.bf16.mxu0 0
  %372 = vmatpush1.bf16.xpose.msra.mxu0 0
  %373 = vmatprep.subr.bf16.mxu0 0
  %374 = vmatpush1.bf16.xpose.msra.mxu0 0
  %375 = vmatprep.subr.bf16.mxu0 0
  %376 = vmatpush1.bf16.xpose.msra.mxu0 0
  %377 = vmatprep.subr.bf16.mxu0 0
  %378 = vmatpush1.bf16.xpose.msra.mxu0 0
  %379 = vmatprep.subr.bf16.mxu0 0
  %380 = vmatpush1.bf16.xpose.msra.mxu0 %v363
  %381 = vmatprep.subr.bf16.mxu0 0
  %382 = vmatpush2.bf16.xpose.msra.mxu0 0
  %383 = vmatprep.subr.bf16.mxu0 0
  %384 = vmatpush2.bf16.xpose.msra.mxu0 0
  %385 = vmatprep.subr.bf16.mxu0 0
  %386 = vmatpush2.bf16.xpose.msra.mxu0 0
  %387 = vmatprep.subr.bf16.mxu0 0
  %388 = vmatpush2.bf16.xpose.msra.mxu0 0
  %389 = vmatprep.subr.bf16.mxu0 0
  %390 = vmatpush2.bf16.xpose.msra.mxu0 0
  %391 = vmatprep.subr.bf16.mxu0 0
  %392 = vmatpush2.bf16.xpose.msra.mxu0 0
  %393 = vmatprep.subr.bf16.mxu0 0
  %394 = vmatpush2.bf16.xpose.msra.mxu0 0
  %395 = vmatprep.subr.bf16.mxu0 0
  %396 = vmatpush2.bf16.xpose.msra.mxu0 0
  %397 = vmatprep.mubr.bf16.mxu0 0
  %398 = vmatmul.mubr.bf16.gmra.mxu0 %v360
  %v399 = vpop.f32.mrf.mxu0
  %v400 = vadd.f32 0.0, %v399
  %v401 = vpop.f32.mrf.mxu0
  %v402 = vpop.f32.mrf.mxu0
  %v403 = vpop.f32.mrf.mxu0
  %404 = vdwg.mxu0
  %v406 = vsel %vm358, %v357, 0
  %v409 = vsel %vm358, %v229, 0
  %411 = vmatprep.subr.bf16.mxu0 0
  %412 = vmatpush1.bf16.xpose.msra.mxu0 0
  %413 = vmatprep.subr.bf16.mxu0 0
  %414 = vmatpush1.bf16.xpose.msra.mxu0 0
  %415 = vmatprep.subr.bf16.mxu0 0
  %416 = vmatpush1.bf16.xpose.msra.mxu0 0
  %417 = vmatprep.subr.bf16.mxu0 0
  %418 = vmatpush1.bf16.xpose.msra.mxu0 0
  %419 = vmatprep.subr.bf16.mxu0 0
  %420 = vmatpush1.bf16.xpose.msra.mxu0 0
  %421 = vmatprep.subr.bf16.mxu0 0
  %422 = vmatpush1.bf16.xpose.msra.mxu0 0
  %423 = vmatprep.subr.bf16.mxu0 0
  %424 = vmatpush1.bf16.xpose.msra.mxu0 0
  %425 = vmatprep.subr.bf16.mxu0 0
  %426 = vmatpush1.bf16.xpose.msra.mxu0 %v409
  %427 = vmatprep.subr.bf16.mxu0 0
  %428 = vmatpush2.bf16.xpose.msra.mxu0 0
  %429 = vmatprep.subr.bf16.mxu0 0
  %430 = vmatpush2.bf16.xpose.msra.mxu0 0
  %431 = vmatprep.subr.bf16.mxu0 0
  %432 = vmatpush2.bf16.xpose.msra.mxu0 0
  %433 = vmatprep.subr.bf16.mxu0 0
  %434 = vmatpush2.bf16.xpose.msra.mxu0 0
  %435 = vmatprep.subr.bf16.mxu0 0
  %436 = vmatpush2.bf16.xpose.msra.mxu0 0
  %437 = vmatprep.subr.bf16.mxu0 0
  %438 = vmatpush2.bf16.xpose.msra.mxu0 0
  %439 = vmatprep.subr.bf16.mxu0 0
  %440 = vmatpush2.bf16.xpose.msra.mxu0 0
  %441 = vmatprep.subr.bf16.mxu0 0
  %442 = vmatpush2.bf16.xpose.msra.mxu0 0
  %443 = vmatprep.mubr.bf16.mxu0 0
  %444 = vmatmul.mubr.bf16.gmra.mxu0 %v406
  %v445 = vpop.f32.mrf.mxu0
  %v446 = vadd.f32 0.0, %v445
  %v447 = vpop.f32.mrf.mxu0
  %v448 = vpop.f32.mrf.mxu0
  %v449 = vpop.f32.mrf.mxu0
  %450 = vdwg.mxu0
  %v451 = vmul.f32 %v400, 0.35355338
  %v452 = vmul.f32 %v446, 0.35355338
  %v453 = vsel %vm141, 1, 0
  %vm454 = vcmp.eq.s32.totalorder %v453, 1
  %v455 = vsel %vm454, %v451, -1e+30
  %v456 = vsel %vm454, %v452, -1e+30
  %v457 = vsel %vm358, %v455, -inf
  %458 = vmax.xlane.f32.xlu0 %v457
  %v459 = vpop.xlane.xlu0 %458
  %v460 = vsel %vm358, %v456, -inf
  %461 = vmax.xlane.f32.xlu0 %v460
  %v462 = vpop.xlane.xlu0 %461
  %v463 = vsub.f32 %v455, %v459
  %v464 = vsub.f32 %v456, %v462
  %v465 = vmul.f32 %v463, 1.442695
  %v466 = vpow.pop %v465
  %v467 = vmul.f32 %v464, 1.442695
  %v468 = vpow.pop %v467
  %v469 = vsel %vm358, %v466, 0.0
  %470 = vadd.xlane.f32.xlu0 %v469
  %v471 = vpop.xlane.xlu0 %470
  %v472 = vsel %vm358, %v468, 0.0
  %473 = vadd.xlane.f32.xlu0 %v472
  %v474 = vpop.xlane.xlu0 %473
  %v475 = vrcp.pop %v471
  %v476 = vrcp.pop %v474
  %v477 = vmul.f32 %v466, %v475
  %v478 = vmul.f32 %v468, %v476
  %v479 = vpack.c.bf16 %v477, %v477
  %v480 = vpack.c.bf16 %v478, %v478
  %482 = vrot.lane.b32.xlu0 %v230, 80
  %v483 = vpop.permute.xlu0 %482
  %v485 = vsel %vm358, %v479, 0
  %vm487 = vcmask 1043456
  %v489 = vsel %vm487, %v483, 0
  %491 = vmatprep.subr.bf16.mxu0 0
  %492 = vmatpush1.bf16.msra.mxu0 0
  %493 = vmatprep.subr.bf16.mxu0 0
  %494 = vmatpush1.bf16.msra.mxu0 0
  %495 = vmatprep.subr.bf16.mxu0 0
  %496 = vmatpush1.bf16.msra.mxu0 0
  %497 = vmatprep.subr.bf16.mxu0 0
  %498 = vmatpush1.bf16.msra.mxu0 0
  %499 = vmatprep.subr.bf16.mxu0 0
  %500 = vmatpush1.bf16.msra.mxu0 0
  %501 = vmatprep.subr.bf16.mxu0 0
  %502 = vmatpush1.bf16.msra.mxu0 0
  %503 = vmatprep.subr.bf16.mxu0 0
  %504 = vmatpush1.bf16.msra.mxu0 0
  %505 = vmatprep.subr.bf16.mxu0 0
  %506 = vmatpush1.bf16.msra.mxu0 %v489
  %507 = vmatprep.subr.bf16.mxu0 0
  %508 = vmatpush2.bf16.msra.mxu0 0
  %509 = vmatprep.subr.bf16.mxu0 0
  %510 = vmatpush2.bf16.msra.mxu0 0
  %511 = vmatprep.subr.bf16.mxu0 0
  %512 = vmatpush2.bf16.msra.mxu0 0
  %513 = vmatprep.subr.bf16.mxu0 0
  %514 = vmatpush2.bf16.msra.mxu0 0
  %515 = vmatprep.subr.bf16.mxu0 0
  %516 = vmatpush2.bf16.msra.mxu0 0
  %517 = vmatprep.subr.bf16.mxu0 0
  %518 = vmatpush2.bf16.msra.mxu0 0
  %519 = vmatprep.subr.bf16.mxu0 0
  %520 = vmatpush2.bf16.msra.mxu0 0
  %521 = vmatprep.subr.bf16.mxu0 0
  %522 = vmatpush2.bf16.msra.mxu0 0
  %523 = vmatprep.mubr.bf16.mxu0 0
  %524 = vmatmul.mubr.bf16.gmra.mxu0 %v485
  %v525 = vpop.f32.mrf.mxu0
  %v526 = vadd.f32 0.0, %v525
  %v527 = vpop.f32.mrf.mxu0
  %v528 = vpop.f32.mrf.mxu0
  %v529 = vpop.f32.mrf.mxu0
  %530 = vdwg.mxu0
  %532 = vrot.lane.b32.xlu0 %v231, 80
  %v533 = vpop.permute.xlu0 %532
  %v535 = vsel %vm358, %v480, 0
  %v538 = vsel %vm487, %v533, 0
  %540 = vmatprep.subr.bf16.mxu0 0
  %541 = vmatpush1.bf16.msra.mxu0 0
  %542 = vmatprep.subr.bf16.mxu0 0
  %543 = vmatpush1.bf16.msra.mxu0 0
  %544 = vmatprep.subr.bf16.mxu0 0
  %545 = vmatpush1.bf16.msra.mxu0 0
  %546 = vmatprep.subr.bf16.mxu0 0
  %547 = vmatpush1.bf16.msra.mxu0 0
  %548 = vmatprep.subr.bf16.mxu0 0
  %549 = vmatpush1.bf16.msra.mxu0 0
  %550 = vmatprep.subr.bf16.mxu0 0
  %551 = vmatpush1.bf16.msra.mxu0 0
  %552 = vmatprep.subr.bf16.mxu0 0
  %553 = vmatpush1.bf16.msra.mxu0 0
  %554 = vmatprep.subr.bf16.mxu0 0
  %555 = vmatpush1.bf16.msra.mxu0 %v538
  %556 = vmatprep.subr.bf16.mxu0 0
  %557 = vmatpush2.bf16.msra.mxu0 0
  %558 = vmatprep.subr.bf16.mxu0 0
  %559 = vmatpush2.bf16.msra.mxu0 0
  %560 = vmatprep.subr.bf16.mxu0 0
  %561 = vmatpush2.bf16.msra.mxu0 0
  %562 = vmatprep.subr.bf16.mxu0 0
  %563 = vmatpush2.bf16.msra.mxu0 0
  %564 = vmatprep.subr.bf16.mxu0 0
  %565 = vmatpush2.bf16.msra.mxu0 0
  %566 = vmatprep.subr.bf16.mxu0 0
  %567 = vmatpush2.bf16.msra.mxu0 0
  %568 = vmatprep.subr.bf16.mxu0 0
  %569 = vmatpush2.bf16.msra.mxu0 0
  %570 = vmatprep.subr.bf16.mxu0 0
  %571 = vmatpush2.bf16.msra.mxu0 0
  %572 = vmatprep.mubr.bf16.mxu0 0
  %573 = vmatmul.mubr.bf16.gmra.mxu0 %v535
  %v574 = vpop.f32.mrf.mxu0
  %v575 = vadd.f32 0.0, %v574
  %v576 = vpop.f32.mrf.mxu0
  %v577 = vpop.f32.mrf.mxu0
  %v578 = vpop.f32.mrf.mxu0
  %579 = vdwg.mxu0
  %580 = vrot.lane.b32.xlu0 %v133, 8
  %v581 = vpop.permute.xlu0 %580
  %582 = vrot.lane.b32.xlu0 %v134, 8
  %v583 = vpop.permute.xlu0 %582
  %v586 = vmul.f32 %v127, %v581
  %v587 = vmul.f32 %v130, %v583
  %588 = vrot.lane.b32.xlu0 %v135, 10
  %v589 = vpop.permute.xlu0 %588
  %590 = vrot.lane.b32.xlu0 %v136, 10
  %v591 = vpop.permute.xlu0 %590
  %v594 = vmul.f32 %v127, %v589
  %v595 = vmul.f32 %v130, %v591
  %598 = vrot.lane.b32.xlu0 %v594, 126
  %v599 = vpop.permute.xlu0 %598
  %600 = vrot.lane.b32.xlu0 %v595, 126
  %v601 = vpop.permute.xlu0 %600
  %v604 = vsub.f32 %v586, %v599
  %v605 = vsub.f32 %v587, %v601
  %606 = vrot.lane.b32.xlu0 %v133, 10
  %v607 = vpop.permute.xlu0 %606
  %608 = vrot.lane.b32.xlu0 %v134, 10
  %v609 = vpop.permute.xlu0 %608
  %v612 = vmul.f32 %v127, %v607
  %v613 = vmul.f32 %v130, %v609
  %614 = vrot.lane.b32.xlu0 %v135, 8
  %v615 = vpop.permute.xlu0 %614
  %616 = vrot.lane.b32.xlu0 %v136, 8
  %v617 = vpop.permute.xlu0 %616
  %v620 = vmul.f32 %v127, %v615
  %v621 = vmul.f32 %v130, %v617
  %624 = vrot.lane.b32.xlu0 %v620, 2
  %v625 = vpop.permute.xlu0 %624
  %626 = vrot.lane.b32.xlu0 %v621, 2
  %v627 = vpop.permute.xlu0 %626
  %v630 = vadd.f32 %v612, %v625
  %v631 = vadd.f32 %v613, %v627
  %634 = vrot.lane.b32.xlu0 %v604, 120
  %v635 = vpop.permute.xlu0 %634
  %636 = vrot.lane.b32.xlu0 %v605, 120
  %v637 = vpop.permute.xlu0 %636
  %642 = vrot.lane.b32.xlu0 %v630, 120
  %v643 = vpop.permute.xlu0 %642
  %644 = vrot.lane.b32.xlu0 %v631, 120
  %v645 = vpop.permute.xlu0 %644
  %648 = vrot.lane.b32.xlu0 %v127, 120
  %v649 = vpop.permute.xlu0 %648
  %650 = vrot.lane.b32.xlu0 %v130, 120
  %v651 = vpop.permute.xlu0 %650
  %v654 = vsel %vm222, %v635, %v643
  %v655 = vsel %vm222, %v637, %v645
  %v656 = vsel %vm225, %v654, %v649
  %v657 = vsel %vm225, %v655, %v651
  %v658 = vpack.c.bf16 %v656, %v656
  %v659 = vpack.c.bf16 %v657, %v657
  %v661 = vsel %vm358, %v658, 0
  %663 = vmatprep.subr.bf16.mxu0 0
  %664 = vmatpush1.bf16.xpose.msra.mxu0 0
  %665 = vmatprep.subr.bf16.mxu0 0
  %666 = vmatpush1.bf16.xpose.msra.mxu0 0
  %667 = vmatprep.subr.bf16.mxu0 0
  %668 = vmatpush1.bf16.xpose.msra.mxu0 0
  %669 = vmatprep.subr.bf16.mxu0 0
  %670 = vmatpush1.bf16.xpose.msra.mxu0 0
  %671 = vmatprep.subr.bf16.mxu0 0
  %672 = vmatpush1.bf16.xpose.msra.mxu0 0
  %673 = vmatprep.subr.bf16.mxu0 0
  %674 = vmatpush1.bf16.xpose.msra.mxu0 0
  %675 = vmatprep.subr.bf16.mxu0 0
  %676 = vmatpush1.bf16.xpose.msra.mxu0 0
  %677 = vmatprep.subr.bf16.mxu0 0
  %678 = vmatpush1.bf16.xpose.msra.mxu0 %v363
  %679 = vmatprep.subr.bf16.mxu0 0
  %680 = vmatpush2.bf16.xpose.msra.mxu0 0
  %681 = vmatprep.subr.bf16.mxu0 0
  %682 = vmatpush2.bf16.xpose.msra.mxu0 0
  %683 = vmatprep.subr.bf16.mxu0 0
  %684 = vmatpush2.bf16.xpose.msra.mxu0 0
  %685 = vmatprep.subr.bf16.mxu0 0
  %686 = vmatpush2.bf16.xpose.msra.mxu0 0
  %687 = vmatprep.subr.bf16.mxu0 0
  %688 = vmatpush2.bf16.xpose.msra.mxu0 0
  %689 = vmatprep.subr.bf16.mxu0 0
  %690 = vmatpush2.bf16.xpose.msra.mxu0 0
  %691 = vmatprep.subr.bf16.mxu0 0
  %692 = vmatpush2.bf16.xpose.msra.mxu0 0
  %693 = vmatprep.subr.bf16.mxu0 0
  %694 = vmatpush2.bf16.xpose.msra.mxu0 0
  %695 = vmatprep.mubr.bf16.mxu0 0
  %696 = vmatmul.mubr.bf16.gmra.mxu0 %v661
  %v697 = vpop.f32.mrf.mxu0
  %v698 = vadd.f32 0.0, %v697
  %v699 = vpop.f32.mrf.mxu0
  %v700 = vpop.f32.mrf.mxu0
  %v701 = vpop.f32.mrf.mxu0
  %702 = vdwg.mxu0
  %v704 = vsel %vm358, %v659, 0
  %706 = vmatprep.subr.bf16.mxu0 0
  %707 = vmatpush1.bf16.xpose.msra.mxu0 0
  %708 = vmatprep.subr.bf16.mxu0 0
  %709 = vmatpush1.bf16.xpose.msra.mxu0 0
  %710 = vmatprep.subr.bf16.mxu0 0
  %711 = vmatpush1.bf16.xpose.msra.mxu0 0
  %712 = vmatprep.subr.bf16.mxu0 0
  %713 = vmatpush1.bf16.xpose.msra.mxu0 0
  %714 = vmatprep.subr.bf16.mxu0 0
  %715 = vmatpush1.bf16.xpose.msra.mxu0 0
  %716 = vmatprep.subr.bf16.mxu0 0
  %717 = vmatpush1.bf16.xpose.msra.mxu0 0
  %718 = vmatprep.subr.bf16.mxu0 0
  %719 = vmatpush1.bf16.xpose.msra.mxu0 0
  %720 = vmatprep.subr.bf16.mxu0 0
  %721 = vmatpush1.bf16.xpose.msra.mxu0 %v409
  %722 = vmatprep.subr.bf16.mxu0 0
  %723 = vmatpush2.bf16.xpose.msra.mxu0 0
  %724 = vmatprep.subr.bf16.mxu0 0
  %725 = vmatpush2.bf16.xpose.msra.mxu0 0
  %726 = vmatprep.subr.bf16.mxu0 0
  %727 = vmatpush2.bf16.xpose.msra.mxu0 0
  %728 = vmatprep.subr.bf16.mxu0 0
  %729 = vmatpush2.bf16.xpose.msra.mxu0 0
  %730 = vmatprep.subr.bf16.mxu0 0
  %731 = vmatpush2.bf16.xpose.msra.mxu0 0
  %732 = vmatprep.subr.bf16.mxu0 0
  %733 = vmatpush2.bf16.xpose.msra.mxu0 0
  %734 = vmatprep.subr.bf16.mxu0 0
  %735 = vmatpush2.bf16.xpose.msra.mxu0 0
  %736 = vmatprep.subr.bf16.mxu0 0
  %737 = vmatpush2.bf16.xpose.msra.mxu0 0
  %738 = vmatprep.mubr.bf16.mxu0 0
  %739 = vmatmul.mubr.bf16.gmra.mxu0 %v704
  %v740 = vpop.f32.mrf.mxu0
  %v741 = vadd.f32 0.0, %v740
  %v742 = vpop.f32.mrf.mxu0
  %v743 = vpop.f32.mrf.mxu0
  %v744 = vpop.f32.mrf.mxu0
  %745 = vdwg.mxu0
  %v746 = vmul.f32 %v698, 0.35355338
  %v747 = vmul.f32 %v741, 0.35355338
  %v748 = vsel %vm454, %v746, -1e+30
  %v749 = vsel %vm454, %v747, -1e+30
  %v750 = vsel %vm358, %v748, -inf
  %751 = vmax.xlane.f32.xlu0 %v750
  %v752 = vpop.xlane.xlu0 %751
  %v753 = vsel %vm358, %v749, -inf
  %754 = vmax.xlane.f32.xlu0 %v753
  %v755 = vpop.xlane.xlu0 %754
  %v756 = vsub.f32 %v748, %v752
  %v757 = vsub.f32 %v749, %v755
  %v758 = vmul.f32 %v756, 1.442695
  %v759 = vpow.pop %v758
  %v760 = vmul.f32 %v757, 1.442695
  %v761 = vpow.pop %v760
  %v762 = vsel %vm358, %v759, 0.0
  %763 = vadd.xlane.f32.xlu0 %v762
  %v764 = vpop.xlane.xlu0 %763
  %v765 = vsel %vm358, %v761, 0.0
  %766 = vadd.xlane.f32.xlu0 %v765
  %v767 = vpop.xlane.xlu0 %766
  %v768 = vrcp.pop %v764
  %v769 = vrcp.pop %v767
  %v770 = vmul.f32 %v759, %v768
  %v771 = vmul.f32 %v761, %v769
  %v772 = vpack.c.bf16 %v770, %v770
  %v773 = vpack.c.bf16 %v771, %v771
  %v775 = vsel %vm358, %v772, 0
  %777 = vmatprep.subr.bf16.mxu0 0
  %778 = vmatpush1.bf16.msra.mxu0 0
  %779 = vmatprep.subr.bf16.mxu0 0
  %780 = vmatpush1.bf16.msra.mxu0 0
  %781 = vmatprep.subr.bf16.mxu0 0
  %782 = vmatpush1.bf16.msra.mxu0 0
  %783 = vmatprep.subr.bf16.mxu0 0
  %784 = vmatpush1.bf16.msra.mxu0 0
  %785 = vmatprep.subr.bf16.mxu0 0
  %786 = vmatpush1.bf16.msra.mxu0 0
  %787 = vmatprep.subr.bf16.mxu0 0
  %788 = vmatpush1.bf16.msra.mxu0 0
  %789 = vmatprep.subr.bf16.mxu0 0
  %790 = vmatpush1.bf16.msra.mxu0 0
  %791 = vmatprep.subr.bf16.mxu0 0
  %792 = vmatpush1.bf16.msra.mxu0 %v489
  %793 = vmatprep.subr.bf16.mxu0 0
  %794 = vmatpush2.bf16.msra.mxu0 0
  %795 = vmatprep.subr.bf16.mxu0 0
  %796 = vmatpush2.bf16.msra.mxu0 0
  %797 = vmatprep.subr.bf16.mxu0 0
  %798 = vmatpush2.bf16.msra.mxu0 0
  %799 = vmatprep.subr.bf16.mxu0 0
  %800 = vmatpush2.bf16.msra.mxu0 0
  %801 = vmatprep.subr.bf16.mxu0 0
  %802 = vmatpush2.bf16.msra.mxu0 0
  %803 = vmatprep.subr.bf16.mxu0 0
  %804 = vmatpush2.bf16.msra.mxu0 0
  %805 = vmatprep.subr.bf16.mxu0 0
  %806 = vmatpush2.bf16.msra.mxu0 0
  %807 = vmatprep.subr.bf16.mxu0 0
  %808 = vmatpush2.bf16.msra.mxu0 0
  %809 = vmatprep.mubr.bf16.mxu0 0
  %810 = vmatmul.mubr.bf16.gmra.mxu0 %v775
  %v811 = vpop.f32.mrf.mxu0
  %v812 = vadd.f32 0.0, %v811
  %v813 = vpop.f32.mrf.mxu0
  %v814 = vpop.f32.mrf.mxu0
  %v815 = vpop.f32.mrf.mxu0
  %816 = vdwg.mxu0
  %v818 = vsel %vm358, %v773, 0
  %820 = vmatprep.subr.bf16.mxu0 0
  %821 = vmatpush1.bf16.msra.mxu0 0
  %822 = vmatprep.subr.bf16.mxu0 0
  %823 = vmatpush1.bf16.msra.mxu0 0
  %824 = vmatprep.subr.bf16.mxu0 0
  %825 = vmatpush1.bf16.msra.mxu0 0
  %826 = vmatprep.subr.bf16.mxu0 0
  %827 = vmatpush1.bf16.msra.mxu0 0
  %828 = vmatprep.subr.bf16.mxu0 0
  %829 = vmatpush1.bf16.msra.mxu0 0
  %830 = vmatprep.subr.bf16.mxu0 0
  %831 = vmatpush1.bf16.msra.mxu0 0
  %832 = vmatprep.subr.bf16.mxu0 0
  %833 = vmatpush1.bf16.msra.mxu0 0
  %834 = vmatprep.subr.bf16.mxu0 0
  %835 = vmatpush1.bf16.msra.mxu0 %v538
  %836 = vmatprep.subr.bf16.mxu0 0
  %837 = vmatpush2.bf16.msra.mxu0 0
  %838 = vmatprep.subr.bf16.mxu0 0
  %839 = vmatpush2.bf16.msra.mxu0 0
  %840 = vmatprep.subr.bf16.mxu0 0
  %841 = vmatpush2.bf16.msra.mxu0 0
  %842 = vmatprep.subr.bf16.mxu0 0
  %843 = vmatpush2.bf16.msra.mxu0 0
  %844 = vmatprep.subr.bf16.mxu0 0
  %845 = vmatpush2.bf16.msra.mxu0 0
  %846 = vmatprep.subr.bf16.mxu0 0
  %847 = vmatpush2.bf16.msra.mxu0 0
  %848 = vmatprep.subr.bf16.mxu0 0
  %849 = vmatpush2.bf16.msra.mxu0 0
  %850 = vmatprep.subr.bf16.mxu0 0
  %851 = vmatpush2.bf16.msra.mxu0 0
  %852 = vmatprep.mubr.bf16.mxu0 0
  %853 = vmatmul.mubr.bf16.gmra.mxu0 %v818
  %v854 = vpop.f32.mrf.mxu0
  %v855 = vadd.f32 0.0, %v854
  %v856 = vpop.f32.mrf.mxu0
  %v857 = vpop.f32.mrf.mxu0
  %v858 = vpop.f32.mrf.mxu0
  %859 = vdwg.mxu0
  %860 = vrot.lane.b32.xlu0 %v133, 16
  %v861 = vpop.permute.xlu0 %860
  %862 = vrot.lane.b32.xlu0 %v134, 16
  %v863 = vpop.permute.xlu0 %862
  %v866 = vmul.f32 %v127, %v861
  %v867 = vmul.f32 %v130, %v863
  %868 = vrot.lane.b32.xlu0 %v135, 18
  %v869 = vpop.permute.xlu0 %868
  %870 = vrot.lane.b32.xlu0 %v136, 18
  %v871 = vpop.permute.xlu0 %870
  %v874 = vmul.f32 %v127, %v869
  %v875 = vmul.f32 %v130, %v871
  %878 = vrot.lane.b32.xlu0 %v874, 126
  %v879 = vpop.permute.xlu0 %878
  %880 = vrot.lane.b32.xlu0 %v875, 126
  %v881 = vpop.permute.xlu0 %880
  %v884 = vsub.f32 %v866, %v879
  %v885 = vsub.f32 %v867, %v881
  %886 = vrot.lane.b32.xlu0 %v133, 18
  %v887 = vpop.permute.xlu0 %886
  %888 = vrot.lane.b32.xlu0 %v134, 18
  %v889 = vpop.permute.xlu0 %888
  %v892 = vmul.f32 %v127, %v887
  %v893 = vmul.f32 %v130, %v889
  %894 = vrot.lane.b32.xlu0 %v135, 16
  %v895 = vpop.permute.xlu0 %894
  %896 = vrot.lane.b32.xlu0 %v136, 16
  %v897 = vpop.permute.xlu0 %896
  %v900 = vmul.f32 %v127, %v895
  %v901 = vmul.f32 %v130, %v897
  %904 = vrot.lane.b32.xlu0 %v900, 2
  %v905 = vpop.permute.xlu0 %904
  %906 = vrot.lane.b32.xlu0 %v901, 2
  %v907 = vpop.permute.xlu0 %906
  %v910 = vadd.f32 %v892, %v905
  %v911 = vadd.f32 %v893, %v907
  %914 = vrot.lane.b32.xlu0 %v884, 112
  %v915 = vpop.permute.xlu0 %914
  %916 = vrot.lane.b32.xlu0 %v885, 112
  %v917 = vpop.permute.xlu0 %916
  %922 = vrot.lane.b32.xlu0 %v910, 112
  %v923 = vpop.permute.xlu0 %922
  %924 = vrot.lane.b32.xlu0 %v911, 112
  %v925 = vpop.permute.xlu0 %924
  %928 = vrot.lane.b32.xlu0 %v127, 112
  %v929 = vpop.permute.xlu0 %928
  %930 = vrot.lane.b32.xlu0 %v130, 112
  %v931 = vpop.permute.xlu0 %930
  %v934 = vsel %vm222, %v915, %v923
  %v935 = vsel %vm222, %v917, %v925
  %v936 = vsel %vm225, %v934, %v929
  %v937 = vsel %vm225, %v935, %v931
  %v938 = vpack.c.bf16 %v936, %v936
  %v939 = vpack.c.bf16 %v937, %v937
  %v941 = vsel %vm358, %v938, 0
  %v944 = vsel %vm358, %v310, 0
  %946 = vmatprep.subr.bf16.mxu0 0
  %947 = vmatpush1.bf16.xpose.msra.mxu0 0
  %948 = vmatprep.subr.bf16.mxu0 0
  %949 = vmatpush1.bf16.xpose.msra.mxu0 0
  %950 = vmatprep.subr.bf16.mxu0 0
  %951 = vmatpush1.bf16.xpose.msra.mxu0 0
  %952 = vmatprep.subr.bf16.mxu0 0
  %953 = vmatpush1.bf16.xpose.msra.mxu0 0
  %954 = vmatprep.subr.bf16.mxu0 0
  %955 = vmatpush1.bf16.xpose.msra.mxu0 0
  %956 = vmatprep.subr.bf16.mxu0 0
  %957 = vmatpush1.bf16.xpose.msra.mxu0 0
  %958 = vmatprep.subr.bf16.mxu0 0
  %959 = vmatpush1.bf16.xpose.msra.mxu0 0
  %960 = vmatprep.subr.bf16.mxu0 0
  %961 = vmatpush1.bf16.xpose.msra.mxu0 %v944
  %962 = vmatprep.subr.bf16.mxu0 0
  %963 = vmatpush2.bf16.xpose.msra.mxu0 0
  %964 = vmatprep.subr.bf16.mxu0 0
  %965 = vmatpush2.bf16.xpose.msra.mxu0 0
  %966 = vmatprep.subr.bf16.mxu0 0
  %967 = vmatpush2.bf16.xpose.msra.mxu0 0
  %968 = vmatprep.subr.bf16.mxu0 0
  %969 = vmatpush2.bf16.xpose.msra.mxu0 0
  %970 = vmatprep.subr.bf16.mxu0 0
  %971 = vmatpush2.bf16.xpose.msra.mxu0 0
  %972 = vmatprep.subr.bf16.mxu0 0
  %973 = vmatpush2.bf16.xpose.msra.mxu0 0
  %974 = vmatprep.subr.bf16.mxu0 0
  %975 = vmatpush2.bf16.xpose.msra.mxu0 0
  %976 = vmatprep.subr.bf16.mxu0 0
  %977 = vmatpush2.bf16.xpose.msra.mxu0 0
  %978 = vmatprep.mubr.bf16.mxu0 0
  %979 = vmatmul.mubr.bf16.gmra.mxu0 %v941
  %v980 = vpop.f32.mrf.mxu0
  %v981 = vadd.f32 0.0, %v980
  %v982 = vpop.f32.mrf.mxu0
  %v983 = vpop.f32.mrf.mxu0
  %v984 = vpop.f32.mrf.mxu0
  %985 = vdwg.mxu0
  %v987 = vsel %vm358, %v939, 0
  %v990 = vsel %vm358, %v311, 0
  %992 = vmatprep.subr.bf16.mxu0 0
  %993 = vmatpush1.bf16.xpose.msra.mxu0 0
  %994 = vmatprep.subr.bf16.mxu0 0
  %995 = vmatpush1.bf16.xpose.msra.mxu0 0
  %996 = vmatprep.subr.bf16.mxu0 0
  %997 = vmatpush1.bf16.xpose.msra.mxu0 0
  %998 = vmatprep.subr.bf16.mxu0 0
  %999 = vmatpush1.bf16.xpose.msra.mxu0 0
  %1000 = vmatprep.subr.bf16.mxu0 0
  %1001 = vmatpush1.bf16.xpose.msra.mxu0 0
  %1002 = vmatprep.subr.bf16.mxu0 0
  %1003 = vmatpush1.bf16.xpose.msra.mxu0 0
  %1004 = vmatprep.subr.bf16.mxu0 0
  %1005 = vmatpush1.bf16.xpose.msra.mxu0 0
  %1006 = vmatprep.subr.bf16.mxu0 0
  %1007 = vmatpush1.bf16.xpose.msra.mxu0 %v990
  %1008 = vmatprep.subr.bf16.mxu0 0
  %1009 = vmatpush2.bf16.xpose.msra.mxu0 0
  %1010 = vmatprep.subr.bf16.mxu0 0
  %1011 = vmatpush2.bf16.xpose.msra.mxu0 0
  %1012 = vmatprep.subr.bf16.mxu0 0
  %1013 = vmatpush2.bf16.xpose.msra.mxu0 0
  %1014 = vmatprep.subr.bf16.mxu0 0
  %1015 = vmatpush2.bf16.xpose.msra.mxu0 0
  %1016 = vmatprep.subr.bf16.mxu0 0
  %1017 = vmatpush2.bf16.xpose.msra.mxu0 0
  %1018 = vmatprep.subr.bf16.mxu0 0
  %1019 = vmatpush2.bf16.xpose.msra.mxu0 0
  %1020 = vmatprep.subr.bf16.mxu0 0
  %1021 = vmatpush2.bf16.xpose.msra.mxu0 0
  %1022 = vmatprep.subr.bf16.mxu0 0
  %1023 = vmatpush2.bf16.xpose.msra.mxu0 0
  %1024 = vmatprep.mubr.bf16.mxu0 0
  %1025 = vmatmul.mubr.bf16.gmra.mxu0 %v987
  %v1026 = vpop.f32.mrf.mxu0
  %v1027 = vadd.f32 0.0, %v1026
  %v1028 = vpop.f32.mrf.mxu0
  %v1029 = vpop.f32.mrf.mxu0
  %v1030 = vpop.f32.mrf.mxu0
  %1031 = vdwg.mxu0
  %v1032 = vmul.f32 %v981, 0.35355338
  %v1033 = vmul.f32 %v1027, 0.35355338
  %v1034 = vsel %vm454, %v1032, -1e+30
  %v1035 = vsel %vm454, %v1033, -1e+30
  %v1036 = vsel %vm358, %v1034, -inf
  %1037 = vmax.xlane.f32.xlu0 %v1036
  %v1038 = vpop.xlane.xlu0 %1037
  %v1039 = vsel %vm358, %v1035, -inf
  %1040 = vmax.xlane.f32.xlu0 %v1039
  %v1041 = vpop.xlane.xlu0 %1040
  %v1042 = vsub.f32 %v1034, %v1038
  %v1043 = vsub.f32 %v1035, %v1041
  %v1044 = vmul.f32 %v1042, 1.442695
  %v1045 = vpow.pop %v1044
  %v1046 = vmul.f32 %v1043, 1.442695
  %v1047 = vpow.pop %v1046
  %v1048 = vsel %vm358, %v1045, 0.0
  %1049 = vadd.xlane.f32.xlu0 %v1048
  %v1050 = vpop.xlane.xlu0 %1049
  %v1051 = vsel %vm358, %v1047, 0.0
  %1052 = vadd.xlane.f32.xlu0 %v1051
  %v1053 = vpop.xlane.xlu0 %1052
  %v1054 = vrcp.pop %v1050
  %v1055 = vrcp.pop %v1053
  %v1056 = vmul.f32 %v1045, %v1054
  %v1057 = vmul.f32 %v1047, %v1055
  %v1058 = vpack.c.bf16 %v1056, %v1056
  %v1059 = vpack.c.bf16 %v1057, %v1057
  %1060 = vrot.lane.b32.xlu0 %v230, 72
  %v1061 = vpop.permute.xlu0 %1060
  %v1063 = vsel %vm358, %v1058, 0
  %v1066 = vsel %vm487, %v1061, 0
  %1068 = vmatprep.subr.bf16.mxu0 0
  %1069 = vmatpush1.bf16.msra.mxu0 0
  %1070 = vmatprep.subr.bf16.mxu0 0
  %1071 = vmatpush1.bf16.msra.mxu0 0
  %1072 = vmatprep.subr.bf16.mxu0 0
  %1073 = vmatpush1.bf16.msra.mxu0 0
  %1074 = vmatprep.subr.bf16.mxu0 0
  %1075 = vmatpush1.bf16.msra.mxu0 0
  %1076 = vmatprep.subr.bf16.mxu0 0
  %1077 = vmatpush1.bf16.msra.mxu0 0
  %1078 = vmatprep.subr.bf16.mxu0 0
  %1079 = vmatpush1.bf16.msra.mxu0 0
  %1080 = vmatprep.subr.bf16.mxu0 0
  %1081 = vmatpush1.bf16.msra.mxu0 0
  %1082 = vmatprep.subr.bf16.mxu0 0
  %1083 = vmatpush1.bf16.msra.mxu0 %v1066
  %1084 = vmatprep.subr.bf16.mxu0 0
  %1085 = vmatpush2.bf16.msra.mxu0 0
  %1086 = vmatprep.subr.bf16.mxu0 0
  %1087 = vmatpush2.bf16.msra.mxu0 0
  %1088 = vmatprep.subr.bf16.mxu0 0
  %1089 = vmatpush2.bf16.msra.mxu0 0
  %1090 = vmatprep.subr.bf16.mxu0 0
  %1091 = vmatpush2.bf16.msra.mxu0 0
  %1092 = vmatprep.subr.bf16.mxu0 0
  %1093 = vmatpush2.bf16.msra.mxu0 0
  %1094 = vmatprep.subr.bf16.mxu0 0
  %1095 = vmatpush2.bf16.msra.mxu0 0
  %1096 = vmatprep.subr.bf16.mxu0 0
  %1097 = vmatpush2.bf16.msra.mxu0 0
  %1098 = vmatprep.subr.bf16.mxu0 0
  %1099 = vmatpush2.bf16.msra.mxu0 0
  %1100 = vmatprep.mubr.bf16.mxu0 0
  %1101 = vmatmul.mubr.bf16.gmra.mxu0 %v1063
  %v1102 = vpop.f32.mrf.mxu0
  %v1103 = vadd.f32 0.0, %v1102
  %v1104 = vpop.f32.mrf.mxu0
  %v1105 = vpop.f32.mrf.mxu0
  %v1106 = vpop.f32.mrf.mxu0
  %1107 = vdwg.mxu0
  %1108 = vrot.lane.b32.xlu0 %v231, 72
  %v1109 = vpop.permute.xlu0 %1108
  %v1111 = vsel %vm358, %v1059, 0
  %v1114 = vsel %vm487, %v1109, 0
  %1116 = vmatprep.subr.bf16.mxu0 0
  %1117 = vmatpush1.bf16.msra.mxu0 0
  %1118 = vmatprep.subr.bf16.mxu0 0
  %1119 = vmatpush1.bf16.msra.mxu0 0
  %1120 = vmatprep.subr.bf16.mxu0 0
  %1121 = vmatpush1.bf16.msra.mxu0 0
  %1122 = vmatprep.subr.bf16.mxu0 0
  %1123 = vmatpush1.bf16.msra.mxu0 0
  %1124 = vmatprep.subr.bf16.mxu0 0
  %1125 = vmatpush1.bf16.msra.mxu0 0
  %1126 = vmatprep.subr.bf16.mxu0 0
  %1127 = vmatpush1.bf16.msra.mxu0 0
  %1128 = vmatprep.subr.bf16.mxu0 0
  %1129 = vmatpush1.bf16.msra.mxu0 0
  %1130 = vmatprep.subr.bf16.mxu0 0
  %1131 = vmatpush1.bf16.msra.mxu0 %v1114
  %1132 = vmatprep.subr.bf16.mxu0 0
  %1133 = vmatpush2.bf16.msra.mxu0 0
  %1134 = vmatprep.subr.bf16.mxu0 0
  %1135 = vmatpush2.bf16.msra.mxu0 0
  %1136 = vmatprep.subr.bf16.mxu0 0
  %1137 = vmatpush2.bf16.msra.mxu0 0
  %1138 = vmatprep.subr.bf16.mxu0 0
  %1139 = vmatpush2.bf16.msra.mxu0 0
  %1140 = vmatprep.subr.bf16.mxu0 0
  %1141 = vmatpush2.bf16.msra.mxu0 0
  %1142 = vmatprep.subr.bf16.mxu0 0
  %1143 = vmatpush2.bf16.msra.mxu0 0
  %1144 = vmatprep.subr.bf16.mxu0 0
  %1145 = vmatpush2.bf16.msra.mxu0 0
  %1146 = vmatprep.subr.bf16.mxu0 0
  %1147 = vmatpush2.bf16.msra.mxu0 0
  %1148 = vmatprep.mubr.bf16.mxu0 0
  %1149 = vmatmul.mubr.bf16.gmra.mxu0 %v1111
  %v1150 = vpop.f32.mrf.mxu0
  %v1151 = vadd.f32 0.0, %v1150
  %v1152 = vpop.f32.mrf.mxu0
  %v1153 = vpop.f32.mrf.mxu0
  %v1154 = vpop.f32.mrf.mxu0
  %1155 = vdwg.mxu0
  %1156 = vrot.lane.b32.xlu0 %v133, 24
  %v1157 = vpop.permute.xlu0 %1156
  %1158 = vrot.lane.b32.xlu0 %v134, 24
  %v1159 = vpop.permute.xlu0 %1158
  %v1162 = vmul.f32 %v127, %v1157
  %v1163 = vmul.f32 %v130, %v1159
  %1164 = vrot.lane.b32.xlu0 %v135, 26
  %v1165 = vpop.permute.xlu0 %1164
  %1166 = vrot.lane.b32.xlu0 %v136, 26
  %v1167 = vpop.permute.xlu0 %1166
  %v1170 = vmul.f32 %v127, %v1165
  %v1171 = vmul.f32 %v130, %v1167
  %1174 = vrot.lane.b32.xlu0 %v1170, 126
  %v1175 = vpop.permute.xlu0 %1174
  %1176 = vrot.lane.b32.xlu0 %v1171, 126
  %v1177 = vpop.permute.xlu0 %1176
  %v1180 = vsub.f32 %v1162, %v1175
  %v1181 = vsub.f32 %v1163, %v1177
  %1182 = vrot.lane.b32.xlu0 %v133, 26
  %v1183 = vpop.permute.xlu0 %1182
  %1184 = vrot.lane.b32.xlu0 %v134, 26
  %v1185 = vpop.permute.xlu0 %1184
  %v1188 = vmul.f32 %v127, %v1183
  %v1189 = vmul.f32 %v130, %v1185
  %1190 = vrot.lane.b32.xlu0 %v135, 24
  %v1191 = vpop.permute.xlu0 %1190
  %1192 = vrot.lane.b32.xlu0 %v136, 24
  %v1193 = vpop.permute.xlu0 %1192
  %v1196 = vmul.f32 %v127, %v1191
  %v1197 = vmul.f32 %v130, %v1193
  %1200 = vrot.lane.b32.xlu0 %v1196, 2
  %v1201 = vpop.permute.xlu0 %1200
  %1202 = vrot.lane.b32.xlu0 %v1197, 2
  %v1203 = vpop.permute.xlu0 %1202
  %v1206 = vadd.f32 %v1188, %v1201
  %v1207 = vadd.f32 %v1189, %v1203
  %1210 = vrot.lane.b32.xlu0 %v1180, 104
  %v1211 = vpop.permute.xlu0 %1210
  %1212 = vrot.lane.b32.xlu0 %v1181, 104
  %v1213 = vpop.permute.xlu0 %1212
  %1218 = vrot.lane.b32.xlu0 %v1206, 104
  %v1219 = vpop.permute.xlu0 %1218
  %1220 = vrot.lane.b32.xlu0 %v1207, 104
  %v1221 = vpop.permute.xlu0 %1220
  %1224 = vrot.lane.b32.xlu0 %v127, 104
  %v1225 = vpop.permute.xlu0 %1224
  %1226 = vrot.lane.b32.xlu0 %v130, 104
  %v1227 = vpop.permute.xlu0 %1226
  %v1230 = vsel %vm222, %v1211, %v1219
  %v1231 = vsel %vm222, %v1213, %v1221
  %v1232 = vsel %vm225, %v1230, %v1225
  %v1233 = vsel %vm225, %v1231, %v1227
  %v1234 = vpack.c.bf16 %v1232, %v1232
  %v1235 = vpack.c.bf16 %v1233, %v1233
  %v1237 = vsel %vm358, %v1234, 0
  %1239 = vmatprep.subr.bf16.mxu0 0
  %1240 = vmatpush1.bf16.xpose.msra.mxu0 0
  %1241 = vmatprep.subr.bf16.mxu0 0
  %1242 = vmatpush1.bf16.xpose.msra.mxu0 0
  %1243 = vmatprep.subr.bf16.mxu0 0
  %1244 = vmatpush1.bf16.xpose.msra.mxu0 0
  %1245 = vmatprep.subr.bf16.mxu0 0
  %1246 = vmatpush1.bf16.xpose.msra.mxu0 0
  %1247 = vmatprep.subr.bf16.mxu0 0
  %1248 = vmatpush1.bf16.xpose.msra.mxu0 0
  %1249 = vmatprep.subr.bf16.mxu0 0
  %1250 = vmatpush1.bf16.xpose.msra.mxu0 0
  %1251 = vmatprep.subr.bf16.mxu0 0
  %1252 = vmatpush1.bf16.xpose.msra.mxu0 0
  %1253 = vmatprep.subr.bf16.mxu0 0
  %1254 = vmatpush1.bf16.xpose.msra.mxu0 %v944
  %1255 = vmatprep.subr.bf16.mxu0 0
  %1256 = vmatpush2.bf16.xpose.msra.mxu0 0
  %1257 = vmatprep.subr.bf16.mxu0 0
  %1258 = vmatpush2.bf16.xpose.msra.mxu0 0
  %1259 = vmatprep.subr.bf16.mxu0 0
  %1260 = vmatpush2.bf16.xpose.msra.mxu0 0
  %1261 = vmatprep.subr.bf16.mxu0 0
  %1262 = vmatpush2.bf16.xpose.msra.mxu0 0
  %1263 = vmatprep.subr.bf16.mxu0 0
  %1264 = vmatpush2.bf16.xpose.msra.mxu0 0
  %1265 = vmatprep.subr.bf16.mxu0 0
  %1266 = vmatpush2.bf16.xpose.msra.mxu0 0
  %1267 = vmatprep.subr.bf16.mxu0 0
  %1268 = vmatpush2.bf16.xpose.msra.mxu0 0
  %1269 = vmatprep.subr.bf16.mxu0 0
  %1270 = vmatpush2.bf16.xpose.msra.mxu0 0
  %1271 = vmatprep.mubr.bf16.mxu0 0
  %1272 = vmatmul.mubr.bf16.gmra.mxu0 %v1237
  %v1273 = vpop.f32.mrf.mxu0
  %v1274 = vadd.f32 0.0, %v1273
  %v1275 = vpop.f32.mrf.mxu0
  %v1276 = vpop.f32.mrf.mxu0
  %v1277 = vpop.f32.mrf.mxu0
  %1278 = vdwg.mxu0
  %v1280 = vsel %vm358, %v1235, 0
  %1282 = vmatprep.subr.bf16.mxu0 0
  %1283 = vmatpush1.bf16.xpose.msra.mxu0 0
  %1284 = vmatprep.subr.bf16.mxu0 0
  %1285 = vmatpush1.bf16.xpose.msra.mxu0 0
  %1286 = vmatprep.subr.bf16.mxu0 0
  %1287 = vmatpush1.bf16.xpose.msra.mxu0 0
  %1288 = vmatprep.subr.bf16.mxu0 0
  %1289 = vmatpush1.bf16.xpose.msra.mxu0 0
  %1290 = vmatprep.subr.bf16.mxu0 0
  %1291 = vmatpush1.bf16.xpose.msra.mxu0 0
  %1292 = vmatprep.subr.bf16.mxu0 0
  %1293 = vmatpush1.bf16.xpose.msra.mxu0 0
  %1294 = vmatprep.subr.bf16.mxu0 0
  %1295 = vmatpush1.bf16.xpose.msra.mxu0 0
  %1296 = vmatprep.subr.bf16.mxu0 0
  %1297 = vmatpush1.bf16.xpose.msra.mxu0 %v990
  %1298 = vmatprep.subr.bf16.mxu0 0
  %1299 = vmatpush2.bf16.xpose.msra.mxu0 0
  %1300 = vmatprep.subr.bf16.mxu0 0
  %1301 = vmatpush2.bf16.xpose.msra.mxu0 0
  %1302 = vmatprep.subr.bf16.mxu0 0
  %1303 = vmatpush2.bf16.xpose.msra.mxu0 0
  %1304 = vmatprep.subr.bf16.mxu0 0
  %1305 = vmatpush2.bf16.xpose.msra.mxu0 0
  %1306 = vmatprep.subr.bf16.mxu0 0
  %1307 = vmatpush2.bf16.xpose.msra.mxu0 0
  %1308 = vmatprep.subr.bf16.mxu0 0
  %1309 = vmatpush2.bf16.xpose.msra.mxu0 0
  %1310 = vmatprep.subr.bf16.mxu0 0
  %1311 = vmatpush2.bf16.xpose.msra.mxu0 0
  %1312 = vmatprep.subr.bf16.mxu0 0
  %1313 = vmatpush2.bf16.xpose.msra.mxu0 0
  %1314 = vmatprep.mubr.bf16.mxu0 0
  %1315 = vmatmul.mubr.bf16.gmra.mxu0 %v1280
  %v1316 = vpop.f32.mrf.mxu0
  %v1317 = vadd.f32 0.0, %v1316
  %v1318 = vpop.f32.mrf.mxu0
  %v1319 = vpop.f32.mrf.mxu0
  %v1320 = vpop.f32.mrf.mxu0
  %1321 = vdwg.mxu0
  %v1322 = vmul.f32 %v1274, 0.35355338
  %v1323 = vmul.f32 %v1317, 0.35355338
  %v1324 = vsel %vm454, %v1322, -1e+30
  %v1325 = vsel %vm454, %v1323, -1e+30
  %v1326 = vsel %vm358, %v1324, -inf
  %1327 = vmax.xlane.f32.xlu0 %v1326
  %v1328 = vpop.xlane.xlu0 %1327
  %v1329 = vsel %vm358, %v1325, -inf
  %1330 = vmax.xlane.f32.xlu0 %v1329
  %v1331 = vpop.xlane.xlu0 %1330
  %v1332 = vsub.f32 %v1324, %v1328
  %v1333 = vsub.f32 %v1325, %v1331
  %v1334 = vmul.f32 %v1332, 1.442695
  %v1335 = vpow.pop %v1334
  %v1336 = vmul.f32 %v1333, 1.442695
  %v1337 = vpow.pop %v1336
  %v1338 = vsel %vm358, %v1335, 0.0
  %1339 = vadd.xlane.f32.xlu0 %v1338
  %v1340 = vpop.xlane.xlu0 %1339
  %v1341 = vsel %vm358, %v1337, 0.0
  %1342 = vadd.xlane.f32.xlu0 %v1341
  %v1343 = vpop.xlane.xlu0 %1342
  %v1344 = vrcp.pop %v1340
  %v1345 = vrcp.pop %v1343
  %v1346 = vmul.f32 %v1335, %v1344
  %v1347 = vmul.f32 %v1337, %v1345
  %v1348 = vpack.c.bf16 %v1346, %v1346
  %v1349 = vpack.c.bf16 %v1347, %v1347
  %v1351 = vsel %vm358, %v1348, 0
  %1353 = vmatprep.subr.bf16.mxu0 0
  %1354 = vmatpush1.bf16.msra.mxu0 0
  %1355 = vmatprep.subr.bf16.mxu0 0
  %1356 = vmatpush1.bf16.msra.mxu0 0
  %1357 = vmatprep.subr.bf16.mxu0 0
  %1358 = vmatpush1.bf16.msra.mxu0 0
  %1359 = vmatprep.subr.bf16.mxu0 0
  %1360 = vmatpush1.bf16.msra.mxu0 0
  %1361 = vmatprep.subr.bf16.mxu0 0
  %1362 = vmatpush1.bf16.msra.mxu0 0
  %1363 = vmatprep.subr.bf16.mxu0 0
  %1364 = vmatpush1.bf16.msra.mxu0 0
  %1365 = vmatprep.subr.bf16.mxu0 0
  %1366 = vmatpush1.bf16.msra.mxu0 0
  %1367 = vmatprep.subr.bf16.mxu0 0
  %1368 = vmatpush1.bf16.msra.mxu0 %v1066
  %1369 = vmatprep.subr.bf16.mxu0 0
  %1370 = vmatpush2.bf16.msra.mxu0 0
  %1371 = vmatprep.subr.bf16.mxu0 0
  %1372 = vmatpush2.bf16.msra.mxu0 0
  %1373 = vmatprep.subr.bf16.mxu0 0
  %1374 = vmatpush2.bf16.msra.mxu0 0
  %1375 = vmatprep.subr.bf16.mxu0 0
  %1376 = vmatpush2.bf16.msra.mxu0 0
  %1377 = vmatprep.subr.bf16.mxu0 0
  %1378 = vmatpush2.bf16.msra.mxu0 0
  %1379 = vmatprep.subr.bf16.mxu0 0
  %1380 = vmatpush2.bf16.msra.mxu0 0
  %1381 = vmatprep.subr.bf16.mxu0 0
  %1382 = vmatpush2.bf16.msra.mxu0 0
  %1383 = vmatprep.subr.bf16.mxu0 0
  %1384 = vmatpush2.bf16.msra.mxu0 0
  %1385 = vmatprep.mubr.bf16.mxu0 0
  %1386 = vmatmul.mubr.bf16.gmra.mxu0 %v1351
  %v1387 = vpop.f32.mrf.mxu0
  %v1388 = vadd.f32 0.0, %v1387
  %v1389 = vpop.f32.mrf.mxu0
  %v1390 = vpop.f32.mrf.mxu0
  %v1391 = vpop.f32.mrf.mxu0
  %1392 = vdwg.mxu0
  %v1394 = vsel %vm358, %v1349, 0
  %1396 = vmatprep.subr.bf16.mxu0 0
  %1397 = vmatpush1.bf16.msra.mxu0 0
  %1398 = vmatprep.subr.bf16.mxu0 0
  %1399 = vmatpush1.bf16.msra.mxu0 0
  %1400 = vmatprep.subr.bf16.mxu0 0
  %1401 = vmatpush1.bf16.msra.mxu0 0
  %1402 = vmatprep.subr.bf16.mxu0 0
  %1403 = vmatpush1.bf16.msra.mxu0 0
  %1404 = vmatprep.subr.bf16.mxu0 0
  %1405 = vmatpush1.bf16.msra.mxu0 0
  %1406 = vmatprep.subr.bf16.mxu0 0
  %1407 = vmatpush1.bf16.msra.mxu0 0
  %1408 = vmatprep.subr.bf16.mxu0 0
  %1409 = vmatpush1.bf16.msra.mxu0 0
  %1410 = vmatprep.subr.bf16.mxu0 0
  %1411 = vmatpush1.bf16.msra.mxu0 %v1114
  %1412 = vmatprep.subr.bf16.mxu0 0
  %1413 = vmatpush2.bf16.msra.mxu0 0
  %1414 = vmatprep.subr.bf16.mxu0 0
  %1415 = vmatpush2.bf16.msra.mxu0 0
  %1416 = vmatprep.subr.bf16.mxu0 0
  %1417 = vmatpush2.bf16.msra.mxu0 0
  %1418 = vmatprep.subr.bf16.mxu0 0
  %1419 = vmatpush2.bf16.msra.mxu0 0
  %1420 = vmatprep.subr.bf16.mxu0 0
  %1421 = vmatpush2.bf16.msra.mxu0 0
  %1422 = vmatprep.subr.bf16.mxu0 0
  %1423 = vmatpush2.bf16.msra.mxu0 0
  %1424 = vmatprep.subr.bf16.mxu0 0
  %1425 = vmatpush2.bf16.msra.mxu0 0
  %1426 = vmatprep.subr.bf16.mxu0 0
  %1427 = vmatpush2.bf16.msra.mxu0 0
  %1428 = vmatprep.mubr.bf16.mxu0 0
  %1429 = vmatmul.mubr.bf16.gmra.mxu0 %v1394
  %v1430 = vpop.f32.mrf.mxu0
  %v1431 = vadd.f32 0.0, %v1430
  %v1432 = vpop.f32.mrf.mxu0
  %v1433 = vpop.f32.mrf.mxu0
  %v1434 = vpop.f32.mrf.mxu0
  %1435 = vdwg.mxu0
  %1438 = vrot.lane.b32.xlu0 %v812, 8
  %v1439 = vpop.permute.xlu0 %1438
  %1440 = vrot.lane.b32.xlu0 %v855, 8
  %v1441 = vpop.permute.xlu0 %1440
  %1446 = vrot.lane.b32.xlu0 %v1103, 16
  %v1447 = vpop.permute.xlu0 %1446
  %1448 = vrot.lane.b32.xlu0 %v1151, 16
  %v1449 = vpop.permute.xlu0 %1448
  %1454 = vrot.lane.b32.xlu0 %v1388, 24
  %v1455 = vpop.permute.xlu0 %1454
  %1456 = vrot.lane.b32.xlu0 %v1431, 24
  %v1457 = vpop.permute.xlu0 %1456
  %v1460 = vsel %vm358, %v526, %v1439
  %v1461 = vsel %vm358, %v575, %v1441
  %vm1462 = vcmask 130048
  %v1463 = vsel %vm1462, %v1460, %v1447
  %v1464 = vsel %vm1462, %v1461, %v1449
  %vm1465 = vcmask 195584
  %v1466 = vsel %vm1465, %v1463, %v1455
  %v1467 = vsel %vm1465, %v1464, %v1457
  %v1468 = vpack.c.bf16 %v1467, %v1466
  %v1469 = vld [vmem:[%s4] sm:$0xf]
  %v1470 = vld [vmem:[%s4 + $0x4] sm:$0xf]
  %v1471 = vld [vmem:[%s4 + $0x8] sm:$0xf]
  %v1472 = vld [vmem:[%s4 + $0xc] sm:$0xf]
  %v1477 = vunpack.c.l.b16 %v1469
  %v1478 = vunpack.c.l.b16 %v1470
  %v1479 = vunpack.c.l.b16 %v1471
  %v1480 = vunpack.c.l.b16 %v1472
  %v1481 = vpack.c.b16 %v1478, %v1477
  %v1482 = vpack.c.b16 %v1480, %v1479
  %v1486 = vsel %vm41, %v1468, 0
  %1488 = vmatprep.subr.bf16.mxu0 0
  %1489 = vmatpush1.bf16.msra.mxu0 0
  %1490 = vmatprep.subr.bf16.mxu0 0
  %1491 = vmatpush1.bf16.msra.mxu0 0
  %1492 = vmatprep.subr.bf16.mxu0 0
  %1493 = vmatpush1.bf16.msra.mxu0 0
  %1494 = vmatprep.subr.bf16.mxu0 0
  %1495 = vmatpush1.bf16.msra.mxu0 0
  %1496 = vmatprep.subr.bf16.mxu0 0
  %1497 = vmatpush1.bf16.msra.mxu0 0
  %1498 = vmatprep.subr.bf16.mxu0 0
  %1499 = vmatpush1.bf16.msra.mxu0 0
  %1500 = vmatprep.subr.bf16.mxu0 0
  %1501 = vmatpush1.bf16.msra.mxu0 %v1482
  %1502 = vmatprep.subr.bf16.mxu0 0
  %1503 = vmatpush1.bf16.msra.mxu0 %v1481
  %1504 = vmatprep.subr.bf16.mxu0 0
  %1505 = vmatpush2.bf16.msra.mxu0 0
  %1506 = vmatprep.subr.bf16.mxu0 0
  %1507 = vmatpush2.bf16.msra.mxu0 0
  %1508 = vmatprep.subr.bf16.mxu0 0
  %1509 = vmatpush2.bf16.msra.mxu0 0
  %1510 = vmatprep.subr.bf16.mxu0 0
  %1511 = vmatpush2.bf16.msra.mxu0 0
  %1512 = vmatprep.subr.bf16.mxu0 0
  %1513 = vmatpush2.bf16.msra.mxu0 0
  %1514 = vmatprep.subr.bf16.mxu0 0
  %1515 = vmatpush2.bf16.msra.mxu0 0
  %1516 = vmatprep.subr.bf16.mxu0 0
  %1517 = vmatpush2.bf16.msra.mxu0 0
  %1518 = vmatprep.subr.bf16.mxu0 0
  %1519 = vmatpush2.bf16.msra.mxu0 0
  %1520 = vmatprep.mubr.bf16.mxu0 0
  %1521 = vmatmul.mubr.bf16.gmra.mxu0 %v1486
  %v1522 = vpop.f32.mrf.mxu0
  %v1523 = vadd.f32 0.0, %v1522
  %v1524 = vpop.f32.mrf.mxu0
  %v1525 = vpop.f32.mrf.mxu0
  %v1526 = vadd.f32 0.0, %v1525
  %v1527 = vpop.f32.mrf.mxu0
  %1528 = vdwg.mxu0
  %v1529 = vadd.f32 %v36, %v1523
  %v1530 = vadd.f32 %v37, %v1526
  %v1531 = vld [vmem:[%s5] sm:$0x1]
  %v1532 = vmul.f32 %v1529, %v1529
  %v1533 = vmul.f32 %v1530, %v1530
  %v1534 = vsel %vm41, %v1532, 0.0
  %1535 = vadd.xlane.f32.xlu0 %v1534
  %v1536 = vpop.xlane.xlu0 %1535
  %v1537 = vsel %vm41, %v1533, 0.0
  %1538 = vadd.xlane.f32.xlu0 %v1537
  %v1539 = vpop.xlane.xlu0 %1538
  %v1540 = vmul.f32 %v1536, %v48
  %v1541 = vmul.f32 %v1539, %v48
  %v1542 = vadd.f32 %v1540, 1e-05
  %v1543 = vadd.f32 %v1541, 1e-05
  %v1544 = vrsqrt.pop %v1542
  %v1545 = vrsqrt.pop %v1543
  %v1546 = vmul.f32 %v1529, %v1544
  %v1547 = vmul.f32 %v1530, %v1545
  %v1549 = vlaneseq
  %v1550 = vshrl.u32 %v1549, 7
  %v1551 = vsub.s32 0, %v1550
  %v1552 = vrot.slane %v1531, %v1551
  %v1554 = vmul.f32 %v1546, %v1552
  %v1555 = vmul.f32 %v1547, %v1552
  %v1556 = vpack.c.bf16 %v1555, %v1554
  %v1557 = vld [vmem:[%s6] sm:$0xf]
  %v1558 = vld [vmem:[%s6 + $0x4] sm:$0xf]
  %v1559 = vld [vmem:[%s6 + $0x8] sm:$0xf]
  %v1560 = vld [vmem:[%s6 + $0xc] sm:$0xf]
  %v1565 = vunpack.c.l.b16 %v1557
  %v1566 = vunpack.c.l.b16 %v1558
  %v1567 = vunpack.c.l.b16 %v1559
  %v1568 = vunpack.c.l.b16 %v1560
  %v1569 = vpack.c.b16 %v1566, %v1565
  %v1570 = vpack.c.b16 %v1568, %v1567
  %v1574 = vsel %vm41, %v1556, 0
  %1576 = vmatprep.subr.bf16.mxu0 0
  %1577 = vmatpush1.bf16.msra.mxu0 0
  %1578 = vmatprep.subr.bf16.mxu0 0
  %1579 = vmatpush1.bf16.msra.mxu0 0
  %1580 = vmatprep.subr.bf16.mxu0 0
  %1581 = vmatpush1.bf16.msra.mxu0 0
  %1582 = vmatprep.subr.bf16.mxu0 0
  %1583 = vmatpush1.bf16.msra.mxu0 0
  %1584 = vmatprep.subr.bf16.mxu0 0
  %1585 = vmatpush1.bf16.msra.mxu0 0
  %1586 = vmatprep.subr.bf16.mxu0 0
  %1587 = vmatpush1.bf16.msra.mxu0 0
  %1588 = vmatprep.subr.bf16.mxu0 0
  %1589 = vmatpush1.bf16.msra.mxu0 %v1570
  %1590 = vmatprep.subr.bf16.mxu0 0
  %1591 = vmatpush1.bf16.msra.mxu0 %v1569
  %1592 = vmatprep.subr.bf16.mxu0 0
  %1593 = vmatpush2.bf16.msra.mxu0 0
  %1594 = vmatprep.subr.bf16.mxu0 0
  %1595 = vmatpush2.bf16.msra.mxu0 0
  %1596 = vmatprep.subr.bf16.mxu0 0
  %1597 = vmatpush2.bf16.msra.mxu0 0
  %1598 = vmatprep.subr.bf16.mxu0 0
  %1599 = vmatpush2.bf16.msra.mxu0 0
  %1600 = vmatprep.subr.bf16.mxu0 0
  %1601 = vmatpush2.bf16.msra.mxu0 0
  %1602 = vmatprep.subr.bf16.mxu0 0
  %1603 = vmatpush2.bf16.msra.mxu0 0
  %1604 = vmatprep.subr.bf16.mxu0 0
  %1605 = vmatpush2.bf16.msra.mxu0 0
  %1606 = vmatprep.subr.bf16.mxu0 0
  %1607 = vmatpush2.bf16.msra.mxu0 0
  %1608 = vmatprep.mubr.bf16.mxu0 0
  %1609 = vmatmul.mubr.bf16.gmra.mxu0 %v1574
  %v1610 = vpop.f32.mrf.mxu0
  %v1611 = vadd.f32 0.0, %v1610
  %v1612 = vpop.f32.mrf.mxu0
  %v1613 = vpop.f32.mrf.mxu0
  %v1614 = vadd.f32 0.0, %v1613
  %v1615 = vpop.f32.mrf.mxu0
  %1616 = vdwg.mxu0
  %v1617 = vsub.f32 0.0, %v1611
  %v1618 = vsub.f32 0.0, %v1614
  %v1619 = vmul.f32 %v1617, 1.442695
  %v1620 = vpow.pop %v1619
  %v1621 = vmul.f32 %v1618, 1.442695
  %v1622 = vpow.pop %v1621
  %v1623 = vadd.f32 %v1620, 1.0
  %v1624 = vadd.f32 %v1622, 1.0
  %v1625 = vrcp.pop %v1623
  %v1626 = vrcp.pop %v1624
  %v1627 = vmul.f32 %v1611, %v1625
  %v1628 = vmul.f32 %v1614, %v1626
  %1631 = vrot.lane.b32.xlu0 %v1611, 64
  %v1632 = vpop.permute.xlu0 %1631
  %1633 = vrot.lane.b32.xlu0 %v1614, 64
  %v1634 = vpop.permute.xlu0 %1633
  %v1637 = vmul.f32 %v1627, %v1632
  %v1638 = vmul.f32 %v1628, %v1634
  %v1639 = vpack.c.bf16 %v1638, %v1637
  %v1640 = vld [vmem:[%s7] sm:$0xf]
  %v1641 = vld [vmem:[%s7 + $0x4] sm:$0xf]
  %v1642 = vld [vmem:[%s7 + $0x8] sm:$0xf]
  %v1643 = vld [vmem:[%s7 + $0xc] sm:$0xf]
  %v1644 = vld [vmem:[%s7 + $0x10] sm:$0xf]
  %v1645 = vld [vmem:[%s7 + $0x14] sm:$0xf]
  %v1646 = vld [vmem:[%s7 + $0x18] sm:$0xf]
  %v1647 = vld [vmem:[%s7 + $0x1c] sm:$0xf]
  %v1656 = vunpack.c.l.b16 %v1640
  %v1657 = vunpack.c.l.b16 %v1641
  %v1658 = vunpack.c.l.b16 %v1642
  %v1659 = vunpack.c.l.b16 %v1643
  %v1660 = vunpack.c.l.b16 %v1644
  %v1661 = vunpack.c.l.b16 %v1645
  %v1662 = vunpack.c.l.b16 %v1646
  %v1663 = vunpack.c.l.b16 %v1647
  %v1664 = vpack.c.b16 %v1657, %v1656
  %v1665 = vpack.c.b16 %v1659, %v1658
  %v1666 = vpack.c.b16 %v1661, %v1660
  %v1667 = vpack.c.b16 %v1663, %v1662
  %vm1672 = vcmask 523264
  %v1674 = vsel %vm1672, %v1639, 0
  %1676 = vmatprep.subr.bf16.mxu0 0
  %1677 = vmatpush1.bf16.msra.mxu0 0
  %1678 = vmatprep.subr.bf16.mxu0 0
  %1679 = vmatpush1.bf16.msra.mxu0 0
  %1680 = vmatprep.subr.bf16.mxu0 0
  %1681 = vmatpush1.bf16.msra.mxu0 0
  %1682 = vmatprep.subr.bf16.mxu0 0
  %1683 = vmatpush1.bf16.msra.mxu0 0
  %1684 = vmatprep.subr.bf16.mxu0 0
  %1685 = vmatpush1.bf16.msra.mxu0 %v1667
  %1686 = vmatprep.subr.bf16.mxu0 0
  %1687 = vmatpush1.bf16.msra.mxu0 %v1666
  %1688 = vmatprep.subr.bf16.mxu0 0
  %1689 = vmatpush1.bf16.msra.mxu0 %v1665
  %1690 = vmatprep.subr.bf16.mxu0 0
  %1691 = vmatpush1.bf16.msra.mxu0 %v1664
  %1692 = vmatprep.subr.bf16.mxu0 0
  %1693 = vmatpush2.bf16.msra.mxu0 0
  %1694 = vmatprep.subr.bf16.mxu0 0
  %1695 = vmatpush2.bf16.msra.mxu0 0
  %1696 = vmatprep.subr.bf16.mxu0 0
  %1697 = vmatpush2.bf16.msra.mxu0 0
  %1698 = vmatprep.subr.bf16.mxu0 0
  %1699 = vmatpush2.bf16.msra.mxu0 0
  %1700 = vmatprep.subr.bf16.mxu0 0
  %1701 = vmatpush2.bf16.msra.mxu0 0
  %1702 = vmatprep.subr.bf16.mxu0 0
  %1703 = vmatpush2.bf16.msra.mxu0 0
  %1704 = vmatprep.subr.bf16.mxu0 0
  %1705 = vmatpush2.bf16.msra.mxu0 0
  %1706 = vmatprep.subr.bf16.mxu0 0
  %1707 = vmatpush2.bf16.msra.mxu0 0
  %1708 = vmatprep.mubr.bf16.mxu0 0
  %1709 = vmatmul.mubr.bf16.gmra.mxu0 %v1674
  %v1710 = vpop.f32.mrf.mxu0
  %v1711 = vadd.f32 0.0, %v1710
  %v1712 = vpop.f32.mrf.mxu0
  %v1713 = vpop.f32.mrf.mxu0
  %v1714 = vadd.f32 0.0, %v1713
  %v1715 = vpop.f32.mrf.mxu0
  %1716 = vdwg.mxu0
  %v1717 = vadd.f32 %v1529, %v1711
  %v1718 = vadd.f32 %v1530, %v1714
  %1719 = vst.msk [vmem:[%s10] sm:$0xff] %vm41, %v1717
  %1720 = vst.msk [vmem:[%s10 + $0x8] sm:$0xff] %vm41, %v1718
  // Predicated region
  $region42: #{chatglm2_forward.3} parent=0 // pred_check
    _
  $region43: #{chatglm2_forward.3} parent=0 // pred_check_branch
    %1722 = sbr.rel (0) target = $region45
  $region44: #{chatglm2_forward.3} parent=0 // pred_region
    _
  $region45: #{chatglm2_forward.3} parent=0 // pred_fallthru
    _
  // Predicated region
  $region46: #{chatglm2_forward.3} parent=0 // pred_check
    _
  $region47: #{chatglm2_forward.3} parent=0 // pred_check_branch
    %1724 = sbr.rel (0) target = $region49
  $region48: #{chatglm2_forward.3} parent=0 // pred_region
    _
  $region49: #{chatglm2_forward.3} parent=0 // pred_fallthru
    _

</llo_original>
